<compile_context>
chip_gen: v5e
topology: v5e:2x2
jax: 0.10.0
libtpu: 0.0.40
codegen_flags: <defaults>
</compile_context>

<pallas_src>
import functools

import jax
import jax.numpy as jnp
from jax import lax
from jax.experimental import pallas as pl
from jax.experimental.pallas import tpu as pltpu


# ----------------------------------------------------------------------------
# Fused Inception kernel (B_TILE images per grid step)
# ----------------------------------------------------------------------------
def _inception_kernel(x_ref, mm_ref, mb_ref,
                      w1m_ref, bz_ref, w3f_ref, b2b_ref, w5f_ref, b3b_ref,
                      w4_ref, b4b_ref, o_ref, *,
                      H, W, B, ch1, ch3r, ch3, ch5r, ch5, chp):
    HW = H * W
    base = 3 * W                       # flat offset of image row 0 in padded map
    cdt = jnp.bfloat16

    rmask = mm_ref[0:1, :]             # 1.0 inside the valid HxW rows, else 0
    # column-validity multiplicative masks (independent of dy), dx offsets:
    cm_m2, cm_m1, cm_p1, cm_p2 = (mm_ref[1:2, :], mm_ref[2:3, :],
                                  mm_ref[3:4, :], mm_ref[4:5, :])
    # +/-BIG masks for max-pool padding (row band, dx=-1, dx=+1)
    rbig, cbig_m1, cbig_p1 = mb_ref[0:1, :], mb_ref[1:2, :], mb_ref[2:3, :]

    bz = bz_ref[...]                   # (ch1+ch3r+ch5r, 1) f32 merged 1x1 biases

    for b in range(B):                 # unrolled over images in the block
        xb = x_ref[b]                  # (Cin, Lsp) bf16

        # ---- merged 1x1 convs (branch1 + 3x3-reduce + 5x5-reduce), one dot --
        z = jnp.dot(w1m_ref[...], xb, preferred_element_type=jnp.float32)

        # ---- branch1: bias/ReLU applied only on the valid HW window ---------
        b1 = jnp.maximum(z[0:ch1, base:base + HW] + bz[0:ch1], 0.0)
        o_ref[b, 0:ch1, :] = b1

        # ---- branch2: 3x3 conv (pad 1) via im2col --------------------------
        h2 = jnp.maximum(z[ch1:ch1 + ch3r, :] + bz[ch1:ch1 + ch3r], 0.0) * rmask
        h2L = h2 * cm_m1               # pre-masked copy for taps with dx=-1
        h2R = h2 * cm_p1               # pre-masked copy for taps with dx=+1
        a2 = (h2L, h2, h2R)
        taps2 = []
        for dy in range(3):
            for dx in range(3):
                off = (dy + 2) * W + (dx - 1)
                taps2.append(a2[dx][:, off:off + HW])
        cols2 = jnp.concatenate(taps2, axis=0).astype(cdt)   # (9*ch3r, HW)
        b2 = jnp.maximum(
            jnp.dot(w3f_ref[...], cols2, preferred_element_type=jnp.float32)
            + b2b_ref[...], 0.0)
        o_ref[b, ch1:ch1 + ch3, :] = b2

        # ---- branch3: 5x5 conv (pad 2) via im2col --------------------------
        c0 = ch1 + ch3r
        h3 = jnp.maximum(z[c0:c0 + ch5r, :] + bz[c0:c0 + ch5r], 0.0) * rmask
        a3 = (h3 * cm_m2, h3 * cm_m1, h3, h3 * cm_p1, h3 * cm_p2)
        taps3 = []
        for dy in range(5):
            for dx in range(5):
                off = (dy + 1) * W + (dx - 2)
                taps3.append(a3[dx][:, off:off + HW])
        cols3 = jnp.concatenate(taps3, axis=0).astype(cdt)   # (25*ch5r, HW)
        b3 = jnp.maximum(
            jnp.dot(w5f_ref[...], cols3, preferred_element_type=jnp.float32)
            + b3b_ref[...], 0.0)
        o_ref[b, ch1 + ch3:ch1 + ch3 + ch5, :] = b3

        # ---- branch4: 3x3 max-pool (pad 1) + 1x1 conv -----------------------
        # -BIG sentinel (not -inf) for padding; differs from torch only if a
        # real activation were <= -1e30 (never in practice).
        xf32 = xb.astype(jnp.float32)
        xp = jnp.minimum(xf32, rbig)          # -BIG on halo rows / lane tail
        a4 = (jnp.minimum(xp, cbig_m1), xp, jnp.minimum(xp, cbig_p1))
        pooled = a4[1][:, base:base + HW]     # centre tap (dy=1, dx=1)
        for dy in range(3):
            for dx in range(3):
                if dy == 1 and dx == 1:
                    continue
                off = (dy + 2) * W + (dx - 1)
                pooled = jnp.maximum(pooled, a4[dx][:, off:off + HW])
        b4 = jnp.maximum(
            jnp.dot(w4_ref[...], pooled.astype(cdt),
                    preferred_element_type=jnp.float32)
            + b4b_ref[...], 0.0)
        o_ref[b, ch1 + ch3 + ch5:ch1 + ch3 + ch5 + chp, :] = b4


def _pick_b_tile(N, bytes_per_image):
    """Images per grid step: amortize per-step overhead, stay small in VMEM,
    keep >= 2 grid steps when possible (v7x has 2 TensorCores)."""
    budget = 2 * 1024 * 1024
    bt = int(max(1, min(N, 8, budget // max(bytes_per_image, 1))))
    while bt > 1 and (N + bt - 1) // bt < 2:
        bt -= 1
    while N % bt:
        bt -= 1
    return bt


# ----------------------------------------------------------------------------
# Wrapper: pad/flatten once, prep bf16 weights, single pallas_call, reshape
# ----------------------------------------------------------------------------
@jax.jit
def inception_forward(x_nchw, params):
    x = x_nchw.astype(jnp.float32)
    N, Cin, H, W = x.shape
    HW = H * W
    Ls = (H + 6) * W                       # 3 pad rows top/bottom (halo+margin)
    Lsp = ((Ls + 127) // 128) * 128        # lane-align the flattened axis

    # pad rows, flatten, lane-pad, store as bf16 (halves x HBM/VMEM traffic)
    xf = jnp.pad(x, ((0, 0), (0, 0), (3, 3), (0, 0))).reshape(N, Cin, Ls)
    xf = jnp.pad(xf, ((0, 0), (0, 0), (0, Lsp - Ls))).astype(jnp.bfloat16)

    # masks (constants under jit)
    idx = jnp.arange(Lsp)
    valid_row = (idx >= 3 * W) & (idx < (3 + H) * W)
    colj = idx % W

    def colmask(dc):                        # valid columns for horizontal tap dc
        return (colj < W + dc) if dc < 0 else (colj >= dc)

    f32 = jnp.float32
    mm = jnp.stack([valid_row.astype(f32),
                    colmask(-2).astype(f32), colmask(-1).astype(f32),
                    colmask(1).astype(f32), colmask(2).astype(f32)], axis=0)
    BIG = 1e30
    mb = jnp.stack([jnp.where(valid_row, BIG, -BIG),
                    jnp.where(colmask(-1), BIG, -BIG),
                    jnp.where(colmask(1), BIG, -BIG)], axis=0).astype(f32)

    # static channel sizes
    ch1 = params["b1_w"].shape[-1]
    ch3r = params["b2r_w"].shape[-1]
    ch3 = params["b2_w"].shape[-1]
    ch5r = params["b3r_w"].shape[-1]
    ch5 = params["b3_w"].shape[-1]
    chp = params["b4_w"].shape[-1]
    ct = ch1 + ch3 + ch5 + chp

    bdt = jnp.bfloat16
    # merged 1x1 weights (branch1 + 3x3-reduce + 5x5-reduce), bf16 (chz, Cin)
    w1m = jnp.concatenate(
        [params["b1_w"], params["b2r_w"], params["b3r_w"]], axis=-1)[0, 0].T
    w1m = w1m.astype(bdt)
    bz = jnp.concatenate(
        [params["b1_b"], params["b2r_b"], params["b3r_b"]], axis=-1).T  # (chz,1)
    # im2col-flattened conv weights: (ch3, 9*ch3r) / (ch5, 25*ch5r), bf16
    w3f = jnp.transpose(params["b2_w"], (3, 0, 1, 2)).reshape(ch3, 9 * ch3r)
    w3f = w3f.astype(bdt)
    b2b = params["b2_b"].T
    w5f = jnp.transpose(params["b3_w"], (3, 0, 1, 2)).reshape(ch5, 25 * ch5r)
    w5f = w5f.astype(bdt)
    b3b = params["b3_b"].T
    w4 = params["b4_w"][0, 0].T.astype(bdt)                  # (chp, Cin)
    b4b = params["b4_b"].T

    bytes_per_image = Cin * Lsp * 2 + ct * HW * 4
    B_TILE = _pick_b_tile(N, bytes_per_image)

    kernel = functools.partial(
        _inception_kernel, H=H, W=W, B=B_TILE,
        ch1=ch1, ch3r=ch3r, ch3=ch3, ch5r=ch5r, ch5=ch5, chp=chp)

    rep2 = lambda n: (0, 0)
    out = pl.pallas_call(
        kernel,
        out_shape=jax.ShapeDtypeStruct((N, ct, HW), jnp.float32),
        grid=(N // B_TILE,),
        in_specs=[
            pl.BlockSpec((B_TILE, Cin, Lsp), lambda n: (n, 0, 0)),
            pl.BlockSpec(mm.shape, rep2),
            pl.BlockSpec(mb.shape, rep2),
            pl.BlockSpec(w1m.shape, rep2),
            pl.BlockSpec(bz.shape, rep2),
            pl.BlockSpec(w3f.shape, rep2),
            pl.BlockSpec(b2b.shape, rep2),
            pl.BlockSpec(w5f.shape, rep2),
            pl.BlockSpec(b3b.shape, rep2),
            pl.BlockSpec(w4.shape, rep2),
            pl.BlockSpec(b4b.shape, rep2),
        ],
        out_specs=pl.BlockSpec((B_TILE, ct, HW), lambda n: (n, 0, 0)),
        compiler_params=pltpu.CompilerParams(
            dimension_semantics=("parallel",),
            vmem_limit_bytes=32 * 1024 * 1024),
    )(xf, mm, mb, w1m, bz, w3f, b2b, w5f, b3b, w4, b4b)

    return out.reshape(N, ct, H, W)                          # NCHW, like torch


# ----------------------------------------------------------------------------
# Parameter init (HWIO conv weights, (1, Cout) biases)
# ----------------------------------------------------------------------------
def init_inception_params(key, in_channels, ch1x1, ch3x3reduce, ch3x3,
                          ch5x5reduce, ch5x5, ch_pool):
    def conv_init(k, K, cin, cout):
        kw, kb = jax.random.split(k)
        fan_in = cin * K * K
        w = jax.random.normal(kw, (K, K, cin, cout), jnp.float32) / jnp.sqrt(fan_in)
        b = jax.random.normal(kb, (1, cout), jnp.float32) * 0.01
        return w, b

    keys = jax.random.split(key, 6)
    p = {}
    p["b1_w"], p["b1_b"] = conv_init(keys[0], 1, in_channels, ch1x1)
    p["b2r_w"], p["b2r_b"] = conv_init(keys[1], 1, in_channels, ch3x3reduce)
    p["b2_w"], p["b2_b"] = conv_init(keys[2], 3, ch3x3reduce, ch3x3)
    p["b3r_w"], p["b3r_b"] = conv_init(keys[3], 1, in_channels, ch5x5reduce)
    p["b3_w"], p["b3_b"] = conv_init(keys[4], 5, ch5x5reduce, ch5x5)
    p["b4_w"], p["b4_b"] = conv_init(keys[5], 1, in_channels, ch_pool)
    return p


# ----------------------------------------------------------------------------
# Pure-JAX f32 reference (NCHW) for a correctness sanity check
# ----------------------------------------------------------------------------
def _ref_conv_relu(x, w, b, pad):
    y = lax.conv_general_dilated(
        x, w, window_strides=(1, 1), padding=[(pad, pad), (pad, pad)],
        dimension_numbers=("NCHW", "HWIO", "NCHW"))
    return jnp.maximum(y + b[0][None, :, None, None], 0.0)


def _ref_maxpool(x):
    return lax.reduce_window(x, -jnp.inf, lax.max, (1, 1, 3, 3), (1, 1, 1, 1),
                             [(0, 0), (0, 0), (1, 1), (1, 1)])


def inception_reference(x, p):
    x = x.astype(jnp.float32)
    b1 = _ref_conv_relu(x, p["b1_w"], p["b1_b"], 0)
    b2 = _ref_conv_relu(_ref_conv_relu(x, p["b2r_w"], p["b2r_b"], 0),
                        p["b2_w"], p["b2_b"], 1)
    b3 = _ref_conv_relu(_ref_conv_relu(x, p["b3r_w"], p["b3r_b"], 0),
                        p["b3_w"], p["b3_b"], 2)
    b4 = _ref_conv_relu(_ref_maxpool(x), p["b4_w"], p["b4_b"], 0)
    return jnp.concatenate([b1, b2, b3, b4], axis=1)


# ----------------------------------------------------------------------------
if __name__ == "__main__":
    key = jax.random.PRNGKey(0)
    k_x, k_p = jax.random.split(key)

    # Small Inception config: in=4, ch1x1=8, ch3x3reduce=4, ch3x3=8,
    # ch5x5reduce=4, ch5x5=8, ch_pool=8  -> 32 output channels.
    N, C, H, W = 2, 4, 16, 16
    x = jax.random.normal(k_x, (N, C, H, W), jnp.float32)     # NCHW, like torch
    params = init_inception_params(k_p, C, 8, 4, 8, 4, 8, 8)

    out = jax.block_until_ready(inception_forward(x, params))
    assert out.shape == (N, 8 + 8 + 8 + 8, H, W), out.shape

    ref = jax.block_until_ready(inception_reference(x, params))
    # bf16 MXU operands -> loose tolerance vs the f32 reference.
    err = float(jnp.max(jnp.abs(out - ref)))
    assert jnp.allclose(out, ref, rtol=5e-2, atol=5e-2), err

    print("KERNEL_OK")
</pallas_src>

<mosaic_0001>
module attributes {stable_mosaic.version = 11 : i64} {
  func.func @_inception_kernel(%arg0: i32, %arg1: memref<1x4x384xbf16, #tpu.memory_space<vmem>>, %arg2: memref<5x384xf32, #tpu.memory_space<vmem>>, %arg3: memref<3x384xf32, #tpu.memory_space<vmem>>, %arg4: memref<16x4xbf16, #tpu.memory_space<vmem>>, %arg5: memref<16x1xf32, #tpu.memory_space<vmem>>, %arg6: memref<8x36xbf16, #tpu.memory_space<vmem>>, %arg7: memref<8x1xf32, #tpu.memory_space<vmem>>, %arg8: memref<8x100xbf16, #tpu.memory_space<vmem>>, %arg9: memref<8x1xf32, #tpu.memory_space<vmem>>, %arg10: memref<8x4xbf16, #tpu.memory_space<vmem>>, %arg11: memref<8x1xf32, #tpu.memory_space<vmem>>, %arg12: memref<1x32x256xf32, #tpu.memory_space<vmem>>) attributes {dimension_semantics = [#tpu.dimension_semantics<parallel>], iteration_bounds = array<i64: 2>, scalar_prefetch = 0 : i64, scratch_operands = 0 : i64, tpu.core_type = #tpu.core_type<tc>, window_params = [{transform_indices = @transform_0, window_bounds = array<i64: 1, 4, 384>}, {pipeline_mode = #tpu.pipeline_mode<synchronous>, transform_indices = @transform_1, window_bounds = array<i64: 5, 384>}, {pipeline_mode = #tpu.pipeline_mode<synchronous>, transform_indices = @transform_2, window_bounds = array<i64: 3, 384>}, {pipeline_mode = #tpu.pipeline_mode<synchronous>, transform_indices = @transform_3, window_bounds = array<i64: 16, 4>}, {pipeline_mode = #tpu.pipeline_mode<synchronous>, transform_indices = @transform_4, window_bounds = array<i64: 16, 1>}, {pipeline_mode = #tpu.pipeline_mode<synchronous>, transform_indices = @transform_5, window_bounds = array<i64: 8, 36>}, {pipeline_mode = #tpu.pipeline_mode<synchronous>, transform_indices = @transform_6, window_bounds = array<i64: 8, 1>}, {pipeline_mode = #tpu.pipeline_mode<synchronous>, transform_indices = @transform_7, window_bounds = array<i64: 8, 100>}, {pipeline_mode = #tpu.pipeline_mode<synchronous>, transform_indices = @transform_8, window_bounds = array<i64: 8, 1>}, {pipeline_mode = #tpu.pipeline_mode<synchronous>, transform_indices = @transform_9, window_bounds = array<i64: 8, 4>}, {pipeline_mode = #tpu.pipeline_mode<synchronous>, transform_indices = @transform_10, window_bounds = array<i64: 8, 1>}, {transform_indices = @transform_11, window_bounds = array<i64: 1, 32, 256>}]} {
    %c0 = arith.constant 0 : index
    %c0_0 = arith.constant 0 : index
    %0 = vector.load %arg2[%c0, %c0_0] : memref<5x384xf32, #tpu.memory_space<vmem>>, vector<1x384xf32>
    %c1 = arith.constant 1 : index
    %c0_1 = arith.constant 0 : index
    %1 = vector.load %arg2[%c1, %c0_1] : memref<5x384xf32, #tpu.memory_space<vmem>>, vector<1x384xf32>
    %c2 = arith.constant 2 : index
    %c0_2 = arith.constant 0 : index
    %2 = vector.load %arg2[%c2, %c0_2] : memref<5x384xf32, #tpu.memory_space<vmem>>, vector<1x384xf32>
    %c3 = arith.constant 3 : index
    %c0_3 = arith.constant 0 : index
    %3 = vector.load %arg2[%c3, %c0_3] : memref<5x384xf32, #tpu.memory_space<vmem>>, vector<1x384xf32>
    %c4 = arith.constant 4 : index
    %c0_4 = arith.constant 0 : index
    %4 = vector.load %arg2[%c4, %c0_4] : memref<5x384xf32, #tpu.memory_space<vmem>>, vector<1x384xf32>
    %c0_5 = arith.constant 0 : index
    %c0_6 = arith.constant 0 : index
    %5 = vector.load %arg3[%c0_5, %c0_6] : memref<3x384xf32, #tpu.memory_space<vmem>>, vector<1x384xf32>
    %c1_7 = arith.constant 1 : index
    %c0_8 = arith.constant 0 : index
    %6 = vector.load %arg3[%c1_7, %c0_8] : memref<3x384xf32, #tpu.memory_space<vmem>>, vector<1x384xf32>
    %c2_9 = arith.constant 2 : index
    %c0_10 = arith.constant 0 : index
    %7 = vector.load %arg3[%c2_9, %c0_10] : memref<3x384xf32, #tpu.memory_space<vmem>>, vector<1x384xf32>
    %c0_11 = arith.constant 0 : index
    %c0_12 = arith.constant 0 : index
    %8 = vector.load %arg5[%c0_11, %c0_12] : memref<16x1xf32, #tpu.memory_space<vmem>>, vector<16x1xf32>
    %c0_13 = arith.constant 0 : index
    %c0_14 = arith.constant 0 : index
    %c0_15 = arith.constant 0 : index
    %9 = vector.load %arg1[%c0_13, %c0_14, %c0_15] : memref<1x4x384xbf16, #tpu.memory_space<vmem>>, vector<1x4x384xbf16>
    %10 = vector.shape_cast %9 : vector<1x4x384xbf16> to vector<4x384xbf16>
    %c0_16 = arith.constant 0 : index
    %c0_17 = arith.constant 0 : index
    %11 = vector.load %arg4[%c0_16, %c0_17] : memref<16x4xbf16, #tpu.memory_space<vmem>>, vector<16x4xbf16>
    %cst = arith.constant dense<0.000000e+00> : vector<16x384xf32>
    %12 = tpu.matmul %11, %10, %cst {dimension_numbers = #tpu.dot_dimension_numbers<[1], [0], [0], [1], [0, 0, 1, 1], [], []>} : vector<16x4xbf16>, vector<4x384xbf16>, vector<16x384xf32> -> vector<16x384xf32>
    %13 = vector.extract_strided_slice %12 {offsets = [0, 48], sizes = [8, 256], strides = [1, 1]} : vector<16x384xf32> to vector<8x256xf32>
    %14 = vector.extract_strided_slice %8 {offsets = [0, 0], sizes = [8, 1], strides = [1, 1]} : vector<16x1xf32> to vector<8x1xf32>
    %15 = vector.broadcast %14 : vector<8x1xf32> to vector<8x256xf32>
    %16 = arith.addf %13, %15 : vector<8x256xf32>
    %cst_18 = arith.constant 0.000000e+00 : f32
    %17 = vector.broadcast %cst_18 : f32 to vector<8x256xf32>
    %18 = arith.maximumf %16, %17 : vector<8x256xf32>
    %c0_19 = arith.constant 0 : index
    %c0_20 = arith.constant 0 : index
    %c0_21 = arith.constant 0 : index
    %19 = vector.load %arg12[%c0_19, %c0_20, %c0_21] : memref<1x32x256xf32, #tpu.memory_space<vmem>>, vector<1x8x256xf32>
    %20 = vector.shape_cast %19 : vector<1x8x256xf32> to vector<8x256xf32>
    %21 = vector.shape_cast %18 : vector<8x256xf32> to vector<1x8x256xf32>
    tpu.vector_store %arg12[%c0_19, %c0_20, %c0_21], %21 {strides = array<i32>} : memref<1x32x256xf32, #tpu.memory_space<vmem>>, vector<1x8x256xf32>,
    %22 = vector.extract_strided_slice %12 {offsets = [8, 0], sizes = [4, 384], strides = [1, 1]} : vector<16x384xf32> to vector<4x384xf32>
    %23 = vector.extract_strided_slice %8 {offsets = [8, 0], sizes = [4, 1], strides = [1, 1]} : vector<16x1xf32> to vector<4x1xf32>
    %24 = vector.broadcast %23 : vector<4x1xf32> to vector<4x384xf32>
    %25 = arith.addf %22, %24 : vector<4x384xf32>
    %cst_22 = arith.constant 0.000000e+00 : f32
    %26 = vector.broadcast %cst_22 : f32 to vector<4x384xf32>
    %27 = arith.maximumf %25, %26 : vector<4x384xf32>
    %28 = vector.broadcast %0 : vector<1x384xf32> to vector<4x384xf32>
    %29 = arith.mulf %27, %28 : vector<4x384xf32>
    %30 = vector.broadcast %2 : vector<1x384xf32> to vector<4x384xf32>
    %31 = arith.mulf %29, %30 : vector<4x384xf32>
    %32 = vector.broadcast %3 : vector<1x384xf32> to vector<4x384xf32>
    %33 = arith.mulf %29, %32 : vector<4x384xf32>
    %34 = vector.extract_strided_slice %31 {offsets = [0, 31], sizes = [4, 256], strides = [1, 1]} : vector<4x384xf32> to vector<4x256xf32>
    %35 = vector.extract_strided_slice %29 {offsets = [0, 32], sizes = [4, 256], strides = [1, 1]} : vector<4x384xf32> to vector<4x256xf32>
    %36 = vector.extract_strided_slice %33 {offsets = [0, 33], sizes = [4, 256], strides = [1, 1]} : vector<4x384xf32> to vector<4x256xf32>
    %37 = vector.extract_strided_slice %31 {offsets = [0, 47], sizes = [4, 256], strides = [1, 1]} : vector<4x384xf32> to vector<4x256xf32>
    %38 = vector.extract_strided_slice %29 {offsets = [0, 48], sizes = [4, 256], strides = [1, 1]} : vector<4x384xf32> to vector<4x256xf32>
    %39 = vector.extract_strided_slice %33 {offsets = [0, 49], sizes = [4, 256], strides = [1, 1]} : vector<4x384xf32> to vector<4x256xf32>
    %40 = vector.extract_strided_slice %31 {offsets = [0, 63], sizes = [4, 256], strides = [1, 1]} : vector<4x384xf32> to vector<4x256xf32>
    %41 = vector.extract_strided_slice %29 {offsets = [0, 64], sizes = [4, 256], strides = [1, 1]} : vector<4x384xf32> to vector<4x256xf32>
    %42 = vector.extract_strided_slice %33 {offsets = [0, 65], sizes = [4, 256], strides = [1, 1]} : vector<4x384xf32> to vector<4x256xf32>
    %43 = tpu.concatenate %34, %35, %36, %37, %38, %39, %40, %41, %42 in 0 : vector<4x256xf32>, vector<4x256xf32>, vector<4x256xf32>, vector<4x256xf32>, vector<4x256xf32>, vector<4x256xf32>, vector<4x256xf32>, vector<4x256xf32>, vector<4x256xf32> -> vector<36x256xf32>
    %44 = arith.truncf %43 : vector<36x256xf32> to vector<36x256xbf16>
    %c0_23 = arith.constant 0 : index
    %c0_24 = arith.constant 0 : index
    %45 = vector.load %arg6[%c0_23, %c0_24] : memref<8x36xbf16, #tpu.memory_space<vmem>>, vector<8x36xbf16>
    %cst_25 = arith.constant dense<0.000000e+00> : vector<8x256xf32>
    %46 = tpu.matmul %45, %44, %cst_25 {dimension_numbers = #tpu.dot_dimension_numbers<[1], [0], [0], [1], [0, 0, 1, 1], [], []>} : vector<8x36xbf16>, vector<36x256xbf16>, vector<8x256xf32> -> vector<8x256xf32>
    %c0_26 = arith.constant 0 : index
    %c0_27 = arith.constant 0 : index
    %47 = vector.load %arg7[%c0_26, %c0_27] : memref<8x1xf32, #tpu.memory_space<vmem>>, vector<8x1xf32>
    %48 = vector.broadcast %47 : vector<8x1xf32> to vector<8x256xf32>
    %49 = arith.addf %46, %48 : vector<8x256xf32>
    %cst_28 = arith.constant 0.000000e+00 : f32
    %50 = vector.broadcast %cst_28 : f32 to vector<8x256xf32>
    %51 = arith.maximumf %49, %50 : vector<8x256xf32>
    %c0_29 = arith.constant 0 : index
    %c8 = arith.constant 8 : index
    %c0_30 = arith.constant 0 : index
    %52 = vector.load %arg12[%c0_29, %c8, %c0_30] : memref<1x32x256xf32, #tpu.memory_space<vmem>>, vector<1x8x256xf32>
    %53 = vector.shape_cast %52 : vector<1x8x256xf32> to vector<8x256xf32>
    %54 = vector.shape_cast %51 : vector<8x256xf32> to vector<1x8x256xf32>
    tpu.vector_store %arg12[%c0_29, %c8, %c0_30], %54 {strides = array<i32>} : memref<1x32x256xf32, #tpu.memory_space<vmem>>, vector<1x8x256xf32>,
    %55 = vector.extract_strided_slice %12 {offsets = [12, 0], sizes = [4, 384], strides = [1, 1]} : vector<16x384xf32> to vector<4x384xf32>
    %56 = vector.extract_strided_slice %8 {offsets = [12, 0], sizes = [4, 1], strides = [1, 1]} : vector<16x1xf32> to vector<4x1xf32>
    %57 = vector.broadcast %56 : vector<4x1xf32> to vector<4x384xf32>
    %58 = arith.addf %55, %57 : vector<4x384xf32>
    %cst_31 = arith.constant 0.000000e+00 : f32
    %59 = vector.broadcast %cst_31 : f32 to vector<4x384xf32>
    %60 = arith.maximumf %58, %59 : vector<4x384xf32>
    %61 = vector.broadcast %0 : vector<1x384xf32> to vector<4x384xf32>
    %62 = arith.mulf %60, %61 : vector<4x384xf32>
    %63 = vector.broadcast %1 : vector<1x384xf32> to vector<4x384xf32>
    %64 = arith.mulf %62, %63 : vector<4x384xf32>
    %65 = vector.broadcast %2 : vector<1x384xf32> to vector<4x384xf32>
    %66 = arith.mulf %62, %65 : vector<4x384xf32>
    %67 = vector.broadcast %3 : vector<1x384xf32> to vector<4x384xf32>
    %68 = arith.mulf %62, %67 : vector<4x384xf32>
    %69 = vector.broadcast %4 : vector<1x384xf32> to vector<4x384xf32>
    %70 = arith.mulf %62, %69 : vector<4x384xf32>
    %71 = vector.extract_strided_slice %64 {offsets = [0, 14], sizes = [4, 256], strides = [1, 1]} : vector<4x384xf32> to vector<4x256xf32>
    %72 = vector.extract_strided_slice %66 {offsets = [0, 15], sizes = [4, 256], strides = [1, 1]} : vector<4x384xf32> to vector<4x256xf32>
    %73 = vector.extract_strided_slice %62 {offsets = [0, 16], sizes = [4, 256], strides = [1, 1]} : vector<4x384xf32> to vector<4x256xf32>
    %74 = vector.extract_strided_slice %68 {offsets = [0, 17], sizes = [4, 256], strides = [1, 1]} : vector<4x384xf32> to vector<4x256xf32>
    %75 = vector.extract_strided_slice %70 {offsets = [0, 18], sizes = [4, 256], strides = [1, 1]} : vector<4x384xf32> to vector<4x256xf32>
    %76 = vector.extract_strided_slice %64 {offsets = [0, 30], sizes = [4, 256], strides = [1, 1]} : vector<4x384xf32> to vector<4x256xf32>
    %77 = vector.extract_strided_slice %66 {offsets = [0, 31], sizes = [4, 256], strides = [1, 1]} : vector<4x384xf32> to vector<4x256xf32>
    %78 = vector.extract_strided_slice %62 {offsets = [0, 32], sizes = [4, 256], strides = [1, 1]} : vector<4x384xf32> to vector<4x256xf32>
    %79 = vector.extract_strided_slice %68 {offsets = [0, 33], sizes = [4, 256], strides = [1, 1]} : vector<4x384xf32> to vector<4x256xf32>
    %80 = vector.extract_strided_slice %70 {offsets = [0, 34], sizes = [4, 256], strides = [1, 1]} : vector<4x384xf32> to vector<4x256xf32>
    %81 = vector.extract_strided_slice %64 {offsets = [0, 46], sizes = [4, 256], strides = [1, 1]} : vector<4x384xf32> to vector<4x256xf32>
    %82 = vector.extract_strided_slice %66 {offsets = [0, 47], sizes = [4, 256], strides = [1, 1]} : vector<4x384xf32> to vector<4x256xf32>
    %83 = vector.extract_strided_slice %62 {offsets = [0, 48], sizes = [4, 256], strides = [1, 1]} : vector<4x384xf32> to vector<4x256xf32>
    %84 = vector.extract_strided_slice %68 {offsets = [0, 49], sizes = [4, 256], strides = [1, 1]} : vector<4x384xf32> to vector<4x256xf32>
    %85 = vector.extract_strided_slice %70 {offsets = [0, 50], sizes = [4, 256], strides = [1, 1]} : vector<4x384xf32> to vector<4x256xf32>
    %86 = vector.extract_strided_slice %64 {offsets = [0, 62], sizes = [4, 256], strides = [1, 1]} : vector<4x384xf32> to vector<4x256xf32>
    %87 = vector.extract_strided_slice %66 {offsets = [0, 63], sizes = [4, 256], strides = [1, 1]} : vector<4x384xf32> to vector<4x256xf32>
    %88 = vector.extract_strided_slice %62 {offsets = [0, 64], sizes = [4, 256], strides = [1, 1]} : vector<4x384xf32> to vector<4x256xf32>
    %89 = vector.extract_strided_slice %68 {offsets = [0, 65], sizes = [4, 256], strides = [1, 1]} : vector<4x384xf32> to vector<4x256xf32>
    %90 = vector.extract_strided_slice %70 {offsets = [0, 66], sizes = [4, 256], strides = [1, 1]} : vector<4x384xf32> to vector<4x256xf32>
    %91 = vector.extract_strided_slice %64 {offsets = [0, 78], sizes = [4, 256], strides = [1, 1]} : vector<4x384xf32> to vector<4x256xf32>
    %92 = vector.extract_strided_slice %66 {offsets = [0, 79], sizes = [4, 256], strides = [1, 1]} : vector<4x384xf32> to vector<4x256xf32>
    %93 = vector.extract_strided_slice %62 {offsets = [0, 80], sizes = [4, 256], strides = [1, 1]} : vector<4x384xf32> to vector<4x256xf32>
    %94 = vector.extract_strided_slice %68 {offsets = [0, 81], sizes = [4, 256], strides = [1, 1]} : vector<4x384xf32> to vector<4x256xf32>
    %95 = vector.extract_strided_slice %70 {offsets = [0, 82], sizes = [4, 256], strides = [1, 1]} : vector<4x384xf32> to vector<4x256xf32>
    %96 = tpu.concatenate %71, %72, %73, %74, %75, %76, %77, %78, %79, %80, %81, %82, %83, %84, %85, %86 in 0 : vector<4x256xf32>, vector<4x256xf32>, vector<4x256xf32>, vector<4x256xf32>, vector<4x256xf32>, vector<4x256xf32>, vector<4x256xf32>, vector<4x256xf32>, vector<4x256xf32>, vector<4x256xf32>, vector<4x256xf32>, vector<4x256xf32>, vector<4x256xf32>, vector<4x256xf32>, vector<4x256xf32>, vector<4x256xf32> -> vector<64x256xf32>
    %97 = tpu.concatenate %87, %88, %89, %90, %91, %92, %93, %94, %95 in 0 : vector<4x256xf32>, vector<4x256xf32>, vector<4x256xf32>, vector<4x256xf32>, vector<4x256xf32>, vector<4x256xf32>, vector<4x256xf32>, vector<4x256xf32>, vector<4x256xf32> -> vector<36x256xf32>
    %98 = tpu.concatenate %96, %97 in 0 : vector<64x256xf32>, vector<36x256xf32> -> vector<100x256xf32>
    %99 = arith.truncf %98 : vector<100x256xf32> to vector<100x256xbf16>
    %c0_32 = arith.constant 0 : index
    %c0_33 = arith.constant 0 : index
    %100 = vector.load %arg8[%c0_32, %c0_33] : memref<8x100xbf16, #tpu.memory_space<vmem>>, vector<8x100xbf16>
    %cst_34 = arith.constant dense<0.000000e+00> : vector<8x256xf32>
    %101 = tpu.matmul %100, %99, %cst_34 {dimension_numbers = #tpu.dot_dimension_numbers<[1], [0], [0], [1], [0, 0, 1, 1], [], []>} : vector<8x100xbf16>, vector<100x256xbf16>, vector<8x256xf32> -> vector<8x256xf32>
    %c0_35 = arith.constant 0 : index
    %c0_36 = arith.constant 0 : index
    %102 = vector.load %arg9[%c0_35, %c0_36] : memref<8x1xf32, #tpu.memory_space<vmem>>, vector<8x1xf32>
    %103 = vector.broadcast %102 : vector<8x1xf32> to vector<8x256xf32>
    %104 = arith.addf %101, %103 : vector<8x256xf32>
    %cst_37 = arith.constant 0.000000e+00 : f32
    %105 = vector.broadcast %cst_37 : f32 to vector<8x256xf32>
    %106 = arith.maximumf %104, %105 : vector<8x256xf32>
    %c0_38 = arith.constant 0 : index
    %c16 = arith.constant 16 : index
    %c0_39 = arith.constant 0 : index
    %107 = vector.load %arg12[%c0_38, %c16, %c0_39] : memref<1x32x256xf32, #tpu.memory_space<vmem>>, vector<1x8x256xf32>
    %108 = vector.shape_cast %107 : vector<1x8x256xf32> to vector<8x256xf32>
    %109 = vector.shape_cast %106 : vector<8x256xf32> to vector<1x8x256xf32>
    tpu.vector_store %arg12[%c0_38, %c16, %c0_39], %109 {strides = array<i32>} : memref<1x32x256xf32, #tpu.memory_space<vmem>>, vector<1x8x256xf32>,
    %110 = arith.extf %10 : vector<4x384xbf16> to vector<4x384xf32>
    %111 = vector.broadcast %5 : vector<1x384xf32> to vector<4x384xf32>
    %112 = arith.minimumf %110, %111 : vector<4x384xf32>
    %113 = vector.broadcast %6 : vector<1x384xf32> to vector<4x384xf32>
    %114 = arith.minimumf %112, %113 : vector<4x384xf32>
    %115 = vector.broadcast %7 : vector<1x384xf32> to vector<4x384xf32>
    %116 = arith.minimumf %112, %115 : vector<4x384xf32>
    %117 = vector.extract_strided_slice %112 {offsets = [0, 48], sizes = [4, 256], strides = [1, 1]} : vector<4x384xf32> to vector<4x256xf32>
    %118 = vector.extract_strided_slice %114 {offsets = [0, 31], sizes = [4, 256], strides = [1, 1]} : vector<4x384xf32> to vector<4x256xf32>
    %119 = arith.maximumf %117, %118 : vector<4x256xf32>
    %120 = vector.extract_strided_slice %112 {offsets = [0, 32], sizes = [4, 256], strides = [1, 1]} : vector<4x384xf32> to vector<4x256xf32>
    %121 = arith.maximumf %119, %120 : vector<4x256xf32>
    %122 = vector.extract_strided_slice %116 {offsets = [0, 33], sizes = [4, 256], strides = [1, 1]} : vector<4x384xf32> to vector<4x256xf32>
    %123 = arith.maximumf %121, %122 : vector<4x256xf32>
    %124 = vector.extract_strided_slice %114 {offsets = [0, 47], sizes = [4, 256], strides = [1, 1]} : vector<4x384xf32> to vector<4x256xf32>
    %125 = arith.maximumf %123, %124 : vector<4x256xf32>
    %126 = vector.extract_strided_slice %116 {offsets = [0, 49], sizes = [4, 256], strides = [1, 1]} : vector<4x384xf32> to vector<4x256xf32>
    %127 = arith.maximumf %125, %126 : vector<4x256xf32>
    %128 = vector.extract_strided_slice %114 {offsets = [0, 63], sizes = [4, 256], strides = [1, 1]} : vector<4x384xf32> to vector<4x256xf32>
    %129 = arith.maximumf %127, %128 : vector<4x256xf32>
    %130 = vector.extract_strided_slice %112 {offsets = [0, 64], sizes = [4, 256], strides = [1, 1]} : vector<4x384xf32> to vector<4x256xf32>
    %131 = arith.maximumf %129, %130 : vector<4x256xf32>
    %132 = vector.extract_strided_slice %116 {offsets = [0, 65], sizes = [4, 256], strides = [1, 1]} : vector<4x384xf32> to vector<4x256xf32>
    %133 = arith.maximumf %131, %132 : vector<4x256xf32>
    %c0_40 = arith.constant 0 : index
    %c0_41 = arith.constant 0 : index
    %134 = vector.load %arg10[%c0_40, %c0_41] : memref<8x4xbf16, #tpu.memory_space<vmem>>, vector<8x4xbf16>
    %135 = arith.truncf %133 : vector<4x256xf32> to vector<4x256xbf16>
    %cst_42 = arith.constant dense<0.000000e+00> : vector<8x256xf32>
    %136 = tpu.matmul %134, %135, %cst_42 {dimension_numbers = #tpu.dot_dimension_numbers<[1], [0], [0], [1], [0, 0, 1, 1], [], []>} : vector<8x4xbf16>, vector<4x256xbf16>, vector<8x256xf32> -> vector<8x256xf32>
    %c0_43 = arith.constant 0 : index
    %c0_44 = arith.constant 0 : index
    %137 = vector.load %arg11[%c0_43, %c0_44] : memref<8x1xf32, #tpu.memory_space<vmem>>, vector<8x1xf32>
    %138 = vector.broadcast %137 : vector<8x1xf32> to vector<8x256xf32>
    %139 = arith.addf %136, %138 : vector<8x256xf32>
    %cst_45 = arith.constant 0.000000e+00 : f32
    %140 = vector.broadcast %cst_45 : f32 to vector<8x256xf32>
    %141 = arith.maximumf %139, %140 : vector<8x256xf32>
    %c0_46 = arith.constant 0 : index
    %c24 = arith.constant 24 : index
    %c0_47 = arith.constant 0 : index
    %142 = vector.load %arg12[%c0_46, %c24, %c0_47] : memref<1x32x256xf32, #tpu.memory_space<vmem>>, vector<1x8x256xf32>
    %143 = vector.shape_cast %142 : vector<1x8x256xf32> to vector<8x256xf32>
    %144 = vector.shape_cast %141 : vector<8x256xf32> to vector<1x8x256xf32>
    tpu.vector_store %arg12[%c0_46, %c24, %c0_47], %144 {strides = array<i32>} : memref<1x32x256xf32, #tpu.memory_space<vmem>>, vector<1x8x256xf32>,
    return
  }
  func.func @transform_0(%arg0: i32) -> (i32, i32, i32) {
    %c0_i32 = arith.constant 0 : i32
    %c0_i32_0 = arith.constant 0 : i32
    %c0_i32_1 = arith.constant 0 : i32
    return %arg0, %c0_i32, %c0_i32_0 : i32, i32, i32
  }
  func.func @transform_1(%arg0: i32) -> (i32, i32) {
    %c0_i32 = arith.constant 0 : i32
    %c0_i32_0 = arith.constant 0 : i32
    %c0_i32_1 = arith.constant 0 : i32
    return %c0_i32, %c0_i32_0 : i32, i32
  }
  func.func @transform_2(%arg0: i32) -> (i32, i32) {
    %c0_i32 = arith.constant 0 : i32
    %c0_i32_0 = arith.constant 0 : i32
    %c0_i32_1 = arith.constant 0 : i32
    return %c0_i32, %c0_i32_0 : i32, i32
  }
  func.func @transform_3(%arg0: i32) -> (i32, i32) {
    %c0_i32 = arith.constant 0 : i32
    %c0_i32_0 = arith.constant 0 : i32
    %c0_i32_1 = arith.constant 0 : i32
    return %c0_i32, %c0_i32_0 : i32, i32
  }
  func.func @transform_4(%arg0: i32) -> (i32, i32) {
    %c0_i32 = arith.constant 0 : i32
    %c0_i32_0 = arith.constant 0 : i32
    %c0_i32_1 = arith.constant 0 : i32
    return %c0_i32, %c0_i32_0 : i32, i32
  }
  func.func @transform_5(%arg0: i32) -> (i32, i32) {
    %c0_i32 = arith.constant 0 : i32
    %c0_i32_0 = arith.constant 0 : i32
    %c0_i32_1 = arith.constant 0 : i32
    return %c0_i32, %c0_i32_0 : i32, i32
  }
  func.func @transform_6(%arg0: i32) -> (i32, i32) {
    %c0_i32 = arith.constant 0 : i32
    %c0_i32_0 = arith.constant 0 : i32
    %c0_i32_1 = arith.constant 0 : i32
    return %c0_i32, %c0_i32_0 : i32, i32
  }
  func.func @transform_7(%arg0: i32) -> (i32, i32) {
    %c0_i32 = arith.constant 0 : i32
    %c0_i32_0 = arith.constant 0 : i32
    %c0_i32_1 = arith.constant 0 : i32
    return %c0_i32, %c0_i32_0 : i32, i32
  }
  func.func @transform_8(%arg0: i32) -> (i32, i32) {
    %c0_i32 = arith.constant 0 : i32
    %c0_i32_0 = arith.constant 0 : i32
    %c0_i32_1 = arith.constant 0 : i32
    return %c0_i32, %c0_i32_0 : i32, i32
  }
  func.func @transform_9(%arg0: i32) -> (i32, i32) {
    %c0_i32 = arith.constant 0 : i32
    %c0_i32_0 = arith.constant 0 : i32
    %c0_i32_1 = arith.constant 0 : i32
    return %c0_i32, %c0_i32_0 : i32, i32
  }
  func.func @transform_10(%arg0: i32) -> (i32, i32) {
    %c0_i32 = arith.constant 0 : i32
    %c0_i32_0 = arith.constant 0 : i32
    %c0_i32_1 = arith.constant 0 : i32
    return %c0_i32, %c0_i32_0 : i32, i32
  }
  func.func @transform_11(%arg0: i32) -> (i32, i32, i32) {
    %c0_i32 = arith.constant 0 : i32
    %c0_i32_0 = arith.constant 0 : i32
    %c0_i32_1 = arith.constant 0 : i32
    return %arg0, %c0_i32, %c0_i32_0 : i32, i32, i32
  }
}

</mosaic_0001>

<llo_original>
// kernel: inception_forward.1
$region0: #{inception_forward.1}
  #allocation0 [shape = 'u32[]', space=smem, size = 0x4, offset = 0x4, fixed_abs, tag = 'smem constant byte address 0x4 - core index']
  #allocation1 [shape = 'u32[72,128]{1,0:T(1,128)}', space=vmem, size = 0x9000, scoped, tag = 'internal scratch']
  %s0 = inlined_call_operand.vmem [shape: bf16[2,4,384], index: 0, kind: input, shape index: {}]
  %s1 = inlined_call_operand.vmem [shape: f32[5,384], index: 1, kind: input, shape index: {}]
  %s2 = inlined_call_operand.vmem [shape: f32[3,384], index: 2, kind: input, shape index: {}]
  %s3 = inlined_call_operand.vmem [shape: bf16[16,4], index: 3, kind: input, shape index: {}]
  %s4 = inlined_call_operand.vmem [shape: f32[16,1], index: 4, kind: input, shape index: {}]
  %s5 = inlined_call_operand.vmem [shape: bf16[8,36], index: 5, kind: input, shape index: {}]
  %s6 = inlined_call_operand.vmem [shape: f32[8,1], index: 6, kind: input, shape index: {}]
  %s7 = inlined_call_operand.vmem [shape: bf16[8,100], index: 7, kind: input, shape index: {}]
  %s8 = inlined_call_operand.vmem [shape: f32[8,1], index: 8, kind: input, shape index: {}]
  %s9 = inlined_call_operand.vmem [shape: bf16[8,4], index: 9, kind: input, shape index: {}]
  %s10 = inlined_call_operand.vmem [shape: f32[8,1], index: 10, kind: input, shape index: {}]
  %s11 = inlined_call_operand.vmem [shape: f32[2,32,256], index: 11, kind: output, shape index: {}]
  %s12 = sld [smem:[#allocation0]]
  $region77: #{inception_forward.1} parent=0
    _
  %s14 = ssub.s32 1, %s12
  %s15 = scalar_select 0, %s14, %s12
  loop: start=0, step=1, limit=4
  $region2: #{inception_forward.1} parent=0 // loop_pre_header
    _
  $region3: #{inception_forward.1} parent=0 // loop_header
    %s17 = sphi 0, %s21
    %p18 = scmp.ge.s32.totalorder %s17, 4
    %s27 = sphi 0, %s29
    %s30 = sphi 0, %s27
    %s31 = sphi 0, %s30
    %s47 = sphi 0, %s31
    %s51 = sphi 0, %s51
    %s53 = sphi 0, %s51
    %s54 = sphi 0, %s53
    %s68 = sphi 0, %s54
    %s72 = sphi 0, %s72
    %s74 = sphi 0, %s72
    %s75 = sphi 0, %s74
    %s89 = sphi 0, %s75
    %s93 = sphi 0, %s93
    %s95 = sphi 0, %s93
    %s96 = sphi 0, %s95
    %s110 = sphi 0, %s96
    %s114 = sphi 0, %s114
    %s116 = sphi 0, %s114
    %s117 = sphi 0, %s116
    %s131 = sphi 0, %s117
    %s135 = sphi 0, %s135
    %s137 = sphi 0, %s135
    %s138 = sphi 0, %s137
    %s152 = sphi 0, %s138
    %s156 = sphi 0, %s156
    %s158 = sphi 0, %s156
    %s159 = sphi 0, %s158
    %s173 = sphi 0, %s159
    %s177 = sphi 0, %s177
    %s179 = sphi 0, %s177
    %s180 = sphi 0, %s179
    %s194 = sphi 0, %s180
    %s198 = sphi 0, %s198
    %s200 = sphi 0, %s198
    %s201 = sphi 0, %s200
    %s215 = sphi 0, %s201
    %s219 = sphi 0, %s219
    %s221 = sphi 0, %s219
    %s222 = sphi 0, %s221
    %s236 = sphi 0, %s222
    %s240 = sphi 0, %s240
    %s242 = sphi 0, %s240
    %s243 = sphi 0, %s242
    %s257 = sphi 0, %s243
    %s263 = sphi 0, %s265
    %s266 = sphi 0, %s263
    %s267 = sphi 0, %s266
    %s283 = sphi 0, %s267
  $region4: #{inception_forward.1} parent=0 // loop_header_branch
    %20 = sbr.rel (%p18) target = $region8
  $region5: #{inception_forward.1} parent=0 // loop_body
    %s22 = ssub.s32 %s17, 1
    %s23 = ssub.s32 %s17, 2
    %s24 = sadd.s32 %s17, 1
    %s25 = ssub.s32 %s17, %s24
    %p26 = scmp.eq.s32.totalorder %s25, 0
    %s28 = sadd.s32 %s27, 1
    %s29 = scalar_select %p26, %s27, %s28
    %p32 = pneg %p26
    %p33 = scmp.eq.s32.totalorder %s17, 1
    %p34 = por %p32, %p33
    %p35 = scmp.ne.s32.totalorder %s27, %s30
    %p36 = scmp.eq.s32.totalorder %s17, 0
    %p37 = por %p35, %p36
    %p38 = scmp.ne.s32.totalorder %s27, %s30
    %p39 = scmp.eq.s32.totalorder %s22, 1
    %p40 = por %p38, %p39
    %p41 = scmp.ne.s32.totalorder %s30, %s31
    %p42 = scmp.eq.s32.totalorder %s22, 0
    %p43 = por %p41, %p42
    %p44 = scmp.ne.s32.totalorder %s30, %s31
    %p45 = scmp.eq.s32.totalorder %s23, 1
    %p46 = por %p44, %p45
    %p48 = scmp.ne.s32.totalorder %s31, %s47
    %p49 = scmp.eq.s32.totalorder %s23, 0
    %p50 = por %p48, %p49
    %s52 = sadd.s32 %s51, 1
    %p55 = scmp.eq.s32.totalorder %s17, 1
    %p56 = scmp.ne.s32.totalorder %s51, %s53
    %p57 = scmp.eq.s32.totalorder %s17, 0
    %p58 = por %p56, %p57
    %p59 = scmp.ne.s32.totalorder %s51, %s53
    %p60 = scmp.eq.s32.totalorder %s22, 1
    %p61 = por %p59, %p60
    %p62 = scmp.ne.s32.totalorder %s53, %s54
    %p63 = scmp.eq.s32.totalorder %s22, 0
    %p64 = por %p62, %p63
    %p65 = scmp.ne.s32.totalorder %s53, %s54
    %p66 = scmp.eq.s32.totalorder %s23, 1
    %p67 = por %p65, %p66
    %p69 = scmp.ne.s32.totalorder %s54, %s68
    %p70 = scmp.eq.s32.totalorder %s23, 0
    %p71 = por %p69, %p70
    %s73 = sadd.s32 %s72, 1
    %p76 = scmp.eq.s32.totalorder %s17, 1
    %p77 = scmp.ne.s32.totalorder %s72, %s74
    %p78 = scmp.eq.s32.totalorder %s17, 0
    %p79 = por %p77, %p78
    %p80 = scmp.ne.s32.totalorder %s72, %s74
    %p81 = scmp.eq.s32.totalorder %s22, 1
    %p82 = por %p80, %p81
    %p83 = scmp.ne.s32.totalorder %s74, %s75
    %p84 = scmp.eq.s32.totalorder %s22, 0
    %p85 = por %p83, %p84
    %p86 = scmp.ne.s32.totalorder %s74, %s75
    %p87 = scmp.eq.s32.totalorder %s23, 1
    %p88 = por %p86, %p87
    %p90 = scmp.ne.s32.totalorder %s75, %s89
    %p91 = scmp.eq.s32.totalorder %s23, 0
    %p92 = por %p90, %p91
    %s94 = sadd.s32 %s93, 1
    %p97 = scmp.eq.s32.totalorder %s17, 1
    %p98 = scmp.ne.s32.totalorder %s93, %s95
    %p99 = scmp.eq.s32.totalorder %s17, 0
    %p100 = por %p98, %p99
    %p101 = scmp.ne.s32.totalorder %s93, %s95
    %p102 = scmp.eq.s32.totalorder %s22, 1
    %p103 = por %p101, %p102
    %p104 = scmp.ne.s32.totalorder %s95, %s96
    %p105 = scmp.eq.s32.totalorder %s22, 0
    %p106 = por %p104, %p105
    %p107 = scmp.ne.s32.totalorder %s95, %s96
    %p108 = scmp.eq.s32.totalorder %s23, 1
    %p109 = por %p107, %p108
    %p111 = scmp.ne.s32.totalorder %s96, %s110
    %p112 = scmp.eq.s32.totalorder %s23, 0
    %p113 = por %p111, %p112
    %s115 = sadd.s32 %s114, 1
    %p118 = scmp.eq.s32.totalorder %s17, 1
    %p119 = scmp.ne.s32.totalorder %s114, %s116
    %p120 = scmp.eq.s32.totalorder %s17, 0
    %p121 = por %p119, %p120
    %p122 = scmp.ne.s32.totalorder %s114, %s116
    %p123 = scmp.eq.s32.totalorder %s22, 1
    %p124 = por %p122, %p123
    %p125 = scmp.ne.s32.totalorder %s116, %s117
    %p126 = scmp.eq.s32.totalorder %s22, 0
    %p127 = por %p125, %p126
    %p128 = scmp.ne.s32.totalorder %s116, %s117
    %p129 = scmp.eq.s32.totalorder %s23, 1
    %p130 = por %p128, %p129
    %p132 = scmp.ne.s32.totalorder %s117, %s131
    %p133 = scmp.eq.s32.totalorder %s23, 0
    %p134 = por %p132, %p133
    %s136 = sadd.s32 %s135, 1
    %p139 = scmp.eq.s32.totalorder %s17, 1
    %p140 = scmp.ne.s32.totalorder %s135, %s137
    %p141 = scmp.eq.s32.totalorder %s17, 0
    %p142 = por %p140, %p141
    %p143 = scmp.ne.s32.totalorder %s135, %s137
    %p144 = scmp.eq.s32.totalorder %s22, 1
    %p145 = por %p143, %p144
    %p146 = scmp.ne.s32.totalorder %s137, %s138
    %p147 = scmp.eq.s32.totalorder %s22, 0
    %p148 = por %p146, %p147
    %p149 = scmp.ne.s32.totalorder %s137, %s138
    %p150 = scmp.eq.s32.totalorder %s23, 1
    %p151 = por %p149, %p150
    %p153 = scmp.ne.s32.totalorder %s138, %s152
    %p154 = scmp.eq.s32.totalorder %s23, 0
    %p155 = por %p153, %p154
    %s157 = sadd.s32 %s156, 1
    %p160 = scmp.eq.s32.totalorder %s17, 1
    %p161 = scmp.ne.s32.totalorder %s156, %s158
    %p162 = scmp.eq.s32.totalorder %s17, 0
    %p163 = por %p161, %p162
    %p164 = scmp.ne.s32.totalorder %s156, %s158
    %p165 = scmp.eq.s32.totalorder %s22, 1
    %p166 = por %p164, %p165
    %p167 = scmp.ne.s32.totalorder %s158, %s159
    %p168 = scmp.eq.s32.totalorder %s22, 0
    %p169 = por %p167, %p168
    %p170 = scmp.ne.s32.totalorder %s158, %s159
    %p171 = scmp.eq.s32.totalorder %s23, 1
    %p172 = por %p170, %p171
    %p174 = scmp.ne.s32.totalorder %s159, %s173
    %p175 = scmp.eq.s32.totalorder %s23, 0
    %p176 = por %p174, %p175
    %s178 = sadd.s32 %s177, 1
    %p181 = scmp.eq.s32.totalorder %s17, 1
    %p182 = scmp.ne.s32.totalorder %s177, %s179
    %p183 = scmp.eq.s32.totalorder %s17, 0
    %p184 = por %p182, %p183
    %p185 = scmp.ne.s32.totalorder %s177, %s179
    %p186 = scmp.eq.s32.totalorder %s22, 1
    %p187 = por %p185, %p186
    %p188 = scmp.ne.s32.totalorder %s179, %s180
    %p189 = scmp.eq.s32.totalorder %s22, 0
    %p190 = por %p188, %p189
    %p191 = scmp.ne.s32.totalorder %s179, %s180
    %p192 = scmp.eq.s32.totalorder %s23, 1
    %p193 = por %p191, %p192
    %p195 = scmp.ne.s32.totalorder %s180, %s194
    %p196 = scmp.eq.s32.totalorder %s23, 0
    %p197 = por %p195, %p196
    %s199 = sadd.s32 %s198, 1
    %p202 = scmp.eq.s32.totalorder %s17, 1
    %p203 = scmp.ne.s32.totalorder %s198, %s200
    %p204 = scmp.eq.s32.totalorder %s17, 0
    %p205 = por %p203, %p204
    %p206 = scmp.ne.s32.totalorder %s198, %s200
    %p207 = scmp.eq.s32.totalorder %s22, 1
    %p208 = por %p206, %p207
    %p209 = scmp.ne.s32.totalorder %s200, %s201
    %p210 = scmp.eq.s32.totalorder %s22, 0
    %p211 = por %p209, %p210
    %p212 = scmp.ne.s32.totalorder %s200, %s201
    %p213 = scmp.eq.s32.totalorder %s23, 1
    %p214 = por %p212, %p213
    %p216 = scmp.ne.s32.totalorder %s201, %s215
    %p217 = scmp.eq.s32.totalorder %s23, 0
    %p218 = por %p216, %p217
    %s220 = sadd.s32 %s219, 1
    %p223 = scmp.eq.s32.totalorder %s17, 1
    %p224 = scmp.ne.s32.totalorder %s219, %s221
    %p225 = scmp.eq.s32.totalorder %s17, 0
    %p226 = por %p224, %p225
    %p227 = scmp.ne.s32.totalorder %s219, %s221
    %p228 = scmp.eq.s32.totalorder %s22, 1
    %p229 = por %p227, %p228
    %p230 = scmp.ne.s32.totalorder %s221, %s222
    %p231 = scmp.eq.s32.totalorder %s22, 0
    %p232 = por %p230, %p231
    %p233 = scmp.ne.s32.totalorder %s221, %s222
    %p234 = scmp.eq.s32.totalorder %s23, 1
    %p235 = por %p233, %p234
    %p237 = scmp.ne.s32.totalorder %s222, %s236
    %p238 = scmp.eq.s32.totalorder %s23, 0
    %p239 = por %p237, %p238
    %s241 = sadd.s32 %s240, 1
    %p244 = scmp.eq.s32.totalorder %s17, 1
    %p245 = scmp.ne.s32.totalorder %s240, %s242
    %p246 = scmp.eq.s32.totalorder %s17, 0
    %p247 = por %p245, %p246
    %p248 = scmp.ne.s32.totalorder %s240, %s242
    %p249 = scmp.eq.s32.totalorder %s22, 1
    %p250 = por %p248, %p249
    %p251 = scmp.ne.s32.totalorder %s242, %s243
    %p252 = scmp.eq.s32.totalorder %s22, 0
    %p253 = por %p251, %p252
    %p254 = scmp.ne.s32.totalorder %s242, %s243
    %p255 = scmp.eq.s32.totalorder %s23, 1
    %p256 = por %p254, %p255
    %p258 = scmp.ne.s32.totalorder %s243, %s257
    %p259 = scmp.eq.s32.totalorder %s23, 0
    %p260 = por %p258, %p259
    %s261 = ssub.s32 %s17, %s24
    %p262 = scmp.eq.s32.totalorder %s261, 0
    %s264 = sadd.s32 %s263, 1
    %s265 = scalar_select %p262, %s263, %s264
    %p268 = pneg %p262
    %p269 = scmp.eq.s32.totalorder %s17, 1
    %p270 = por %p268, %p269
    %p271 = scmp.ne.s32.totalorder %s263, %s266
    %p272 = scmp.eq.s32.totalorder %s17, 0
    %p273 = por %p271, %p272
    %p274 = scmp.ne.s32.totalorder %s263, %s266
    %p275 = scmp.eq.s32.totalorder %s22, 1
    %p276 = por %p274, %p275
    %p277 = scmp.ne.s32.totalorder %s266, %s267
    %p278 = scmp.eq.s32.totalorder %s22, 0
    %p279 = por %p277, %p278
    %p280 = scmp.ne.s32.totalorder %s266, %s267
    %p281 = scmp.eq.s32.totalorder %s23, 1
    %p282 = por %p280, %p281
    %p284 = scmp.ne.s32.totalorder %s267, %s283
    %p285 = scmp.eq.s32.totalorder %s23, 0
    %p286 = por %p284, %p285
    %p287 = scmp.le.s32.totalorder 1, %s17
    %p288 = scmp.lt.s32.totalorder %s17, 3
    %p289 = pnand %p287, %p288
    %p290 = pneg %p289
    // Predicated region
    $region9: #{inception_forward.1} parent=5 // pred_check
      _
    $region10: #{inception_forward.1} parent=5 // pred_check_branch
      %292 = sbr.rel (%p289) target = $region12
    $region11: #{inception_forward.1} parent=5 // pred_region
      %s293 = ssub.s32 %s17, 1
      // Predicated region
      $region13: #{inception_forward.1} parent=11 // pred_check
        %p294 = pneg %p64
      $region14: #{inception_forward.1} parent=11 // pred_check_branch
        %296 = sbr.rel (%p294) target = $region16
      $region15: #{inception_forward.1} parent=11 // pred_region
        _
      $region16: #{inception_forward.1} parent=11 // pred_fallthru
        _
      // Predicated region
      $region17: #{inception_forward.1} parent=11 // pred_check
        %p297 = pneg %p85
      $region18: #{inception_forward.1} parent=11 // pred_check_branch
        %299 = sbr.rel (%p297) target = $region20
      $region19: #{inception_forward.1} parent=11 // pred_region
        _
      $region20: #{inception_forward.1} parent=11 // pred_fallthru
        _
      // Predicated region
      $region21: #{inception_forward.1} parent=11 // pred_check
        %p300 = pneg %p106
      $region22: #{inception_forward.1} parent=11 // pred_check_branch
        %302 = sbr.rel (%p300) target = $region24
      $region23: #{inception_forward.1} parent=11 // pred_region
        _
      $region24: #{inception_forward.1} parent=11 // pred_fallthru
        _
      // Predicated region
      $region25: #{inception_forward.1} parent=11 // pred_check
        %p303 = pneg %p127
      $region26: #{inception_forward.1} parent=11 // pred_check_branch
        %305 = sbr.rel (%p303) target = $region28
      $region27: #{inception_forward.1} parent=11 // pred_region
        _
      $region28: #{inception_forward.1} parent=11 // pred_fallthru
        _
      // Predicated region
      $region29: #{inception_forward.1} parent=11 // pred_check
        %p306 = pneg %p148
      $region30: #{inception_forward.1} parent=11 // pred_check_branch
        %308 = sbr.rel (%p306) target = $region32
      $region31: #{inception_forward.1} parent=11 // pred_region
        _
      $region32: #{inception_forward.1} parent=11 // pred_fallthru
        _
      // Predicated region
      $region33: #{inception_forward.1} parent=11 // pred_check
        %p309 = pneg %p169
      $region34: #{inception_forward.1} parent=11 // pred_check_branch
        %311 = sbr.rel (%p309) target = $region36
      $region35: #{inception_forward.1} parent=11 // pred_region
        _
      $region36: #{inception_forward.1} parent=11 // pred_fallthru
        _
      // Predicated region
      $region37: #{inception_forward.1} parent=11 // pred_check
        %p312 = pneg %p190
      $region38: #{inception_forward.1} parent=11 // pred_check_branch
        %314 = sbr.rel (%p312) target = $region40
      $region39: #{inception_forward.1} parent=11 // pred_region
        _
      $region40: #{inception_forward.1} parent=11 // pred_fallthru
        _
      // Predicated region
      $region41: #{inception_forward.1} parent=11 // pred_check
        %p315 = pneg %p211
      $region42: #{inception_forward.1} parent=11 // pred_check_branch
        %317 = sbr.rel (%p315) target = $region44
      $region43: #{inception_forward.1} parent=11 // pred_region
        _
      $region44: #{inception_forward.1} parent=11 // pred_fallthru
        _
      // Predicated region
      $region45: #{inception_forward.1} parent=11 // pred_check
        %p318 = pneg %p232
      $region46: #{inception_forward.1} parent=11 // pred_check_branch
        %320 = sbr.rel (%p318) target = $region48
      $region47: #{inception_forward.1} parent=11 // pred_region
        _
      $region48: #{inception_forward.1} parent=11 // pred_fallthru
        _
      // Predicated region
      $region49: #{inception_forward.1} parent=11 // pred_check
        %p321 = pneg %p253
      $region50: #{inception_forward.1} parent=11 // pred_check_branch
        %323 = sbr.rel (%p321) target = $region52
      $region51: #{inception_forward.1} parent=11 // pred_region
        _
      $region52: #{inception_forward.1} parent=11 // pred_fallthru
        _
    $region12: #{inception_forward.1} parent=5 // pred_fallthru
      _
    %p324 = scmp.lt.s32.totalorder %s17, 2
    // Predicated region
    $region53: #{inception_forward.1} parent=5 // pred_check
      %p325 = pneg %p324
    $region54: #{inception_forward.1} parent=5 // pred_check_branch
      %327 = sbr.rel (%p325) target = $region56
    $region55: #{inception_forward.1} parent=5 // pred_region
      // Predicated region
      $region57: #{inception_forward.1} parent=55 // pred_check
        %p328 = pneg %p37
      $region58: #{inception_forward.1} parent=55 // pred_check_branch
        %330 = sbr.rel (%p328) target = $region60
      $region59: #{inception_forward.1} parent=55 // pred_region
        %p331 = scmp.lt.s32.totalorder %s17, 1
        %s332 = scalar_select %p331, %s17, 1
        %s333 = smul.addr %s332, 3
        %s334 = smul.addr %s333, 2
        %s335 = scalar_lea.vmem %s0, %s334
      $region60: #{inception_forward.1} parent=55 // pred_fallthru
        _
    $region56: #{inception_forward.1} parent=5 // pred_fallthru
      _
    %p336 = scmp.le.s32.totalorder 1, %s17
    %p337 = scmp.lt.s32.totalorder %s17, 3
    %p338 = pnand %p336, %p337
    %p339 = pneg %p338
    // Predicated region
    $region61: #{inception_forward.1} parent=5 // pred_check
      _
    $region62: #{inception_forward.1} parent=5 // pred_check_branch
      %341 = sbr.rel (%p338) target = $region64
    $region63: #{inception_forward.1} parent=5 // pred_region
      %s342 = ssub.s32 %s17, 1
      %p343 = scmp.lt.s32.totalorder %s22, 1
      %s344 = scalar_select %p343, %s22, 1
      %s345 = smul.addr %s344, 3
      %s346 = smul.addr %s345, 2
      %s347 = scalar_lea.vmem %s0, %s346
      %p348 = pneg %p43
      %p349 = pneg %p40
      %p350 = pneg %p64
      %p351 = pneg %p61
      %p352 = pneg %p85
      %p353 = pneg %p82
      %p354 = pneg %p106
      %p355 = pneg %p103
      %p356 = pneg %p127
      %p357 = pneg %p124
      %p358 = pneg %p148
      %p359 = pneg %p145
      %p360 = pneg %p169
      %p361 = pneg %p166
      %p362 = pneg %p190
      %p363 = pneg %p187
      %p364 = pneg %p211
      %p365 = pneg %p208
      %p366 = pneg %p232
      %p367 = pneg %p229
      %p368 = pneg %p253
      %p369 = pneg %p250
      %p370 = pneg %p279
      %p371 = pneg %p276
      %p372 = scmp.lt.s32.totalorder %s22, 1
      %s373 = scalar_select %p372, %s22, 1
      %s374 = smul.addr %s373, 8
      %s375 = smul.addr %s374, 8
      %s376 = scalar_lea.vmem %s11, %s375
      %p377 = scmp.lt.s32.totalorder %s22, 1
      %s378 = scalar_select %p377, %s22, 1
      %s379 = smul.addr %s378, 3
      %s380 = smul.addr %s379, 2
      %s381 = scalar_lea.vmem %s0, %s380
      %p382 = scmp.lt.s32.totalorder %s22, 1
      %s383 = scalar_select %p382, %s22, 1
      %s384 = smul.addr %s383, 8
      %s385 = smul.addr %s384, 8
      %s386 = scalar_lea.vmem %s11, %s385
      %v388 = vld [vmem:[%s1] ss:$8 sm:$0x7]
      %s389 = scalar_lea.vmem %s1, 1
      %v390 = vld [vmem:[%s389] ss:$8 sm:$0x7]
      %s391 = scalar_lea.vmem %s1, 2
      %v392 = vld [vmem:[%s391] ss:$8 sm:$0x7]
      %s393 = scalar_lea.vmem %s1, 3
      %v394 = vld [vmem:[%s393] ss:$8 sm:$0x7]
      %s395 = scalar_lea.vmem %s1, 4
      %v396 = vld [vmem:[%s395] ss:$8 sm:$0x7]
      %v397 = vld [vmem:[%s2] ss:$4 sm:$0x7]
      %s398 = scalar_lea.vmem %s2, 1
      %v399 = vld [vmem:[%s398] ss:$4 sm:$0x7]
      %s400 = scalar_lea.vmem %s2, 2
      %v401 = vld [vmem:[%s400] ss:$4 sm:$0x7]
      %v402 = vld [vmem:[%s4] sm:$0xff]
      %v403 = vld [vmem:[%s4 + $0x8] sm:$0xff]
      %v404 = vld [vmem:[%s381] sm:$0x3f]
      %v405 = vld [vmem:[%s3] sm:$0xf]
      %v406 = vld [vmem:[%s3 + $0x4] sm:$0xf]
      %v409 = vunpack.c.l.b16 %v405
      %v410 = vunpack.c.l.b16 %v406
      %v411 = vpack.c.b16 %v410, %v409
      %413 = vst [vmem:[#allocation1] ss:$4 sm:$0xff] %v404
      %v414 = vld.sshfl [vmem:[#allocation1] sm:$0xff pattern:$0x73625140]
      %v415 = vld.sshfl [vmem:[#allocation1 + $0x8] sm:$0xff pattern:$0x73625140]
      %v416 = vld.sshfl [vmem:[#allocation1 + $0x10] sm:$0xff pattern:$0x73625140]
      %vm417 = vcmask 31744
      %v419 = vsel %vm417, %v411, 0
      %vm421 = vcmask 1041408
      %v422 = vsel %vm421, %v414, 0
      %v424 = vsel %vm421, %v415, 0
      %v426 = vsel %vm421, %v416, 0
      %428 = vmatpush.bf16.msra.mxu0 0
      %429 = vmatpush.bf16.msra.mxu0 0
      %430 = vmatpush.bf16.msra.mxu0 0
      %431 = vmatpush.bf16.msra.mxu0 0
      %432 = vmatpush.bf16.msra.mxu0 0
      %433 = vmatpush.bf16.msra.mxu0 0
      %434 = vmatpush.bf16.msra.mxu0 0
      %435 = vmatpush.bf16.msra.mxu0 %v422
      %436 = vmatmul.bf16.gmra.mxu0 %v419
      %v437 = vpop.f32.mrf.mxu0
      %v438 = vadd.f32 0.0, %v437
      %v439 = vpop.f32.mrf.mxu0
      %v440 = vadd.f32 0.0, %v439
      %441 = vdwg.mxu0
      %442 = vmatpush.bf16.msra.mxu0 0
      %443 = vmatpush.bf16.msra.mxu0 0
      %444 = vmatpush.bf16.msra.mxu0 0
      %445 = vmatpush.bf16.msra.mxu0 0
      %446 = vmatpush.bf16.msra.mxu0 0
      %447 = vmatpush.bf16.msra.mxu0 0
      %448 = vmatpush.bf16.msra.mxu0 0
      %449 = vmatpush.bf16.msra.mxu0 %v424
      %450 = vmatmul.bf16.gmra.mxu0 %v419
      %v451 = vpop.f32.mrf.mxu0
      %v452 = vadd.f32 0.0, %v451
      %v453 = vpop.f32.mrf.mxu0
      %v454 = vadd.f32 0.0, %v453
      %455 = vdwg.mxu0
      %456 = vmatpush.bf16.msra.mxu0 0
      %457 = vmatpush.bf16.msra.mxu0 0
      %458 = vmatpush.bf16.msra.mxu0 0
      %459 = vmatpush.bf16.msra.mxu0 0
      %460 = vmatpush.bf16.msra.mxu0 0
      %461 = vmatpush.bf16.msra.mxu0 0
      %462 = vmatpush.bf16.msra.mxu0 0
      %463 = vmatpush.bf16.msra.mxu0 %v426
      %464 = vmatmul.bf16.gmra.mxu0 %v419
      %v465 = vpop.f32.mrf.mxu0
      %v466 = vadd.f32 0.0, %v465
      %v467 = vpop.f32.mrf.mxu0
      %v468 = vadd.f32 0.0, %v467
      %469 = vdwg.mxu0
      %471 = vset.pattern.permute.xlu0 0
      %472 = vperm.xlu0 %471, %v402
      %v473 = vpop.permute.xlu0 %472
      %v475 = vadd.f32 %v438, %v473
      %v476 = vadd.f32 %v452, %v473
      %v477 = vadd.f32 %v466, %v473
      %v478 = vmax.f32 %v475, 0.0
      %v479 = vmax.f32 %v476, 0.0
      %v480 = vmax.f32 %v477, 0.0
      %484 = vrot.lane.b32.xlu0 %v478, 80
      %v485 = vpop.permute.xlu0 %484
      %486 = vrot.lane.b32.xlu0 %v479, 80
      %v487 = vpop.permute.xlu0 %486
      %488 = vrot.lane.b32.xlu0 %v480, 80
      %v489 = vpop.permute.xlu0 %488
      %vm490 = vcmask 654336
      %v491 = vsel %vm490, %v485, %v487
      %v492 = vsel %vm490, %v487, %v489
      %495 = vst [vmem:[%s386] sm:$0xff] %v491
      %496 = vst [vmem:[%s386 + $0x8] sm:$0xff] %v492
      %498 = vset.pattern.permute.xlu0 0
      %499 = vperm.xlu0 %498, %v403
      %v500 = vpop.permute.xlu0 %499
      %v502 = vadd.f32 %v440, %v500
      %v503 = vadd.f32 %v454, %v500
      %v504 = vadd.f32 %v468, %v500
      %v505 = vmax.f32 %v502, 0.0
      %v506 = vmax.f32 %v503, 0.0
      %v507 = vmax.f32 %v504, 0.0
      %v509 = vperm.slane %v388, 0
      %v510 = vperm.slane %v388, 1
      %v511 = vperm.slane %v388, 2
      %v515 = vmul.f32 %v505, %v509
      %v516 = vmul.f32 %v506, %v510
      %v517 = vmul.f32 %v507, %v511
      %v519 = vperm.slane %v392, 0
      %v520 = vperm.slane %v392, 1
      %v521 = vperm.slane %v392, 2
      %v525 = vmul.f32 %v515, %v519
      %v526 = vmul.f32 %v516, %v520
      %v527 = vmul.f32 %v517, %v521
      %v529 = vperm.slane %v394, 0
      %v530 = vperm.slane %v394, 1
      %v531 = vperm.slane %v394, 2
      %v535 = vmul.f32 %v515, %v529
      %v536 = vmul.f32 %v516, %v530
      %v537 = vmul.f32 %v517, %v531
      %v541 = vrot.slane %v515, 4
      %v542 = vrot.slane %v516, 4
      %v543 = vrot.slane %v517, 4
      %544 = vrot.lane.b32.xlu0 %v541, 127
      %v545 = vpop.permute.xlu0 %544
      %546 = vrot.lane.b32.xlu0 %v542, 127
      %v547 = vpop.permute.xlu0 %546
      %548 = vrot.lane.b32.xlu0 %v543, 127
      %v549 = vpop.permute.xlu0 %548
      %vm550 = vcmask 1039360
      %v551 = vsel %vm550, %v545, %v547
      %v552 = vsel %vm550, %v547, %v549
      %559 = vrot.lane.b32.xlu0 %v535, 126
      %v560 = vpop.permute.xlu0 %559
      %561 = vrot.lane.b32.xlu0 %v536, 126
      %v562 = vpop.permute.xlu0 %561
      %563 = vrot.lane.b32.xlu0 %v537, 126
      %v564 = vpop.permute.xlu0 %563
      %vm565 = vcmask 1031168
      %v566 = vsel %vm565, %v560, %v562
      %v567 = vsel %vm565, %v562, %v564
      %v574 = vrot.slane %v525, 4
      %v575 = vrot.slane %v526, 4
      %v576 = vrot.slane %v527, 4
      %577 = vrot.lane.b32.xlu0 %v574, 112
      %v578 = vpop.permute.xlu0 %577
      %579 = vrot.lane.b32.xlu0 %v575, 112
      %v580 = vpop.permute.xlu0 %579
      %581 = vrot.lane.b32.xlu0 %v576, 112
      %v582 = vpop.permute.xlu0 %581
      %vm583 = vcmask 916480
      %v584 = vsel %vm583, %v578, %v580
      %v585 = vsel %vm583, %v580, %v582
      %589 = vrot.lane.b32.xlu0 %v515, 111
      %v590 = vpop.permute.xlu0 %589
      %591 = vrot.lane.b32.xlu0 %v516, 111
      %v592 = vpop.permute.xlu0 %591
      %593 = vrot.lane.b32.xlu0 %v517, 111
      %v594 = vpop.permute.xlu0 %593
      %vm595 = vcmask 908288
      %v596 = vsel %vm595, %v590, %v592
      %v597 = vsel %vm595, %v592, %v594
      %v601 = vrot.slane %v535, 4
      %v602 = vrot.slane %v536, 4
      %v603 = vrot.slane %v537, 4
      %604 = vrot.lane.b32.xlu0 %v601, 110
      %v605 = vpop.permute.xlu0 %604
      %606 = vrot.lane.b32.xlu0 %v602, 110
      %v607 = vpop.permute.xlu0 %606
      %608 = vrot.lane.b32.xlu0 %v603, 110
      %v609 = vpop.permute.xlu0 %608
      %vm610 = vcmask 900096
      %v611 = vsel %vm610, %v605, %v607
      %v612 = vsel %vm610, %v607, %v609
      %616 = vrot.lane.b32.xlu0 %v525, 96
      %v617 = vpop.permute.xlu0 %616
      %618 = vrot.lane.b32.xlu0 %v526, 96
      %v619 = vpop.permute.xlu0 %618
      %620 = vrot.lane.b32.xlu0 %v527, 96
      %v621 = vpop.permute.xlu0 %620
      %vm622 = vcmask 785408
      %v623 = vsel %vm622, %v617, %v619
      %v624 = vsel %vm622, %v619, %v621
      %628 = vrot.lane.b32.xlu0 %v541, 95
      %v629 = vpop.permute.xlu0 %628
      %630 = vrot.lane.b32.xlu0 %v542, 95
      %v631 = vpop.permute.xlu0 %630
      %632 = vrot.lane.b32.xlu0 %v543, 95
      %v633 = vpop.permute.xlu0 %632
      %vm634 = vcmask 777216
      %v635 = vsel %vm634, %v629, %v631
      %v636 = vsel %vm634, %v631, %v633
      %640 = vrot.lane.b32.xlu0 %v535, 94
      %v641 = vpop.permute.xlu0 %640
      %642 = vrot.lane.b32.xlu0 %v536, 94
      %v643 = vpop.permute.xlu0 %642
      %644 = vrot.lane.b32.xlu0 %v537, 94
      %v645 = vpop.permute.xlu0 %644
      %vm646 = vcmask 769024
      %v647 = vsel %vm646, %v641, %v643
      %v648 = vsel %vm646, %v643, %v645
      %vm652 = vcmask 1043456
      %v653 = vsel %vm652, %v525, %v551
      %v654 = vsel %vm652, %v526, %v552
      %v655 = vsel %vm652, %v527, %v549
      %v656 = vsel %vm652, %v566, %v584
      %v657 = vsel %vm652, %v567, %v585
      %v658 = vsel %vm652, %v564, %v582
      %v659 = vsel %vm652, %v596, %v611
      %v660 = vsel %vm652, %v597, %v612
      %v661 = vsel %vm652, %v594, %v609
      %v662 = vsel %vm652, %v623, %v635
      %v663 = vsel %vm652, %v624, %v636
      %v664 = vsel %vm652, %v621, %v633
      %v665 = vpack.c.bf16 %v656, %v653
      %v666 = vpack.c.bf16 %v657, %v654
      %v667 = vpack.c.bf16 %v658, %v655
      %v668 = vpack.c.bf16 %v662, %v659
      %v669 = vpack.c.bf16 %v663, %v660
      %v670 = vpack.c.bf16 %v664, %v661
      %v671 = vpack.c.bf16 %v647, %v647
      %v672 = vpack.c.bf16 %v648, %v648
      %v673 = vpack.c.bf16 %v645, %v645
      %v674 = vld [vmem:[%s5] sm:$0xf]
      %v675 = vld [vmem:[%s6] sm:$0xff]
      %677 = vset.pattern.permute.xlu0 0
      %678 = vperm.xlu0 %677, %v675
      %v679 = vpop.permute.xlu0 %678
      %690 = vrot.lane.b32.xlu0 %v665, 97
      %v691 = vpop.permute.xlu0 %690
      %692 = vrot.lane.b32.xlu0 %v666, 97
      %v693 = vpop.permute.xlu0 %692
      %694 = vrot.lane.b32.xlu0 %v667, 97
      %v695 = vpop.permute.xlu0 %694
      %696 = vrot.lane.b32.xlu0 %v668, 97
      %v697 = vpop.permute.xlu0 %696
      %698 = vrot.lane.b32.xlu0 %v669, 97
      %v699 = vpop.permute.xlu0 %698
      %700 = vrot.lane.b32.xlu0 %v670, 97
      %v701 = vpop.permute.xlu0 %700
      %702 = vrot.lane.b32.xlu0 %v671, 97
      %v703 = vpop.permute.xlu0 %702
      %704 = vrot.lane.b32.xlu0 %v672, 97
      %v705 = vpop.permute.xlu0 %704
      %706 = vrot.lane.b32.xlu0 %v673, 97
      %v707 = vpop.permute.xlu0 %706
      %vm708 = vcmask 793600
      %v709 = vsel %vm708, %v691, %v693
      %v710 = vsel %vm708, %v693, %v695
      %v711 = vsel %vm708, %v697, %v699
      %v712 = vsel %vm708, %v699, %v701
      %v713 = vsel %vm708, %v703, %v705
      %v714 = vsel %vm708, %v705, %v707
      %vm719 = vcmask 293888
      %v721 = vsel %vm719, %v674, 0
      %v724 = vsel %vm421, %v713, 0
      %v727 = vsel %vm421, %v714, 0
      %729 = vmatpush.bf16.msra.mxu0 0
      %730 = vmatpush.bf16.msra.mxu0 0
      %731 = vmatpush.bf16.msra.mxu0 0
      %732 = vmatpush.bf16.msra.mxu0 0
      %733 = vmatpush.bf16.msra.mxu0 0
      %734 = vmatpush.bf16.msra.mxu0 %v724
      %735 = vmatpush.bf16.msra.mxu0 %v711
      %736 = vmatpush.bf16.msra.mxu0 %v709
      %737 = vmatmul.bf16.gmra.mxu0 %v721
      %v738 = vpop.f32.mrf.mxu0
      %v739 = vadd.f32 %v679, %v738
      %v740 = vpop.f32.mrf.mxu0
      %741 = vdwg.mxu0
      %742 = vmatpush.bf16.msra.mxu0 0
      %743 = vmatpush.bf16.msra.mxu0 0
      %744 = vmatpush.bf16.msra.mxu0 0
      %745 = vmatpush.bf16.msra.mxu0 0
      %746 = vmatpush.bf16.msra.mxu0 0
      %747 = vmatpush.bf16.msra.mxu0 %v727
      %748 = vmatpush.bf16.msra.mxu0 %v712
      %749 = vmatpush.bf16.msra.mxu0 %v710
      %750 = vmatmul.bf16.gmra.mxu0 %v721
      %v751 = vpop.f32.mrf.mxu0
      %v752 = vadd.f32 %v679, %v751
      %v753 = vpop.f32.mrf.mxu0
      %754 = vdwg.mxu0
      %v755 = vmax.f32 %v739, 0.0
      %v756 = vmax.f32 %v752, 0.0
      %757 = vst [vmem:[%s386 + $0x10] sm:$0xff] %v755
      %758 = vst [vmem:[%s386 + $0x18] sm:$0xff] %v756
      %v760 = vperm.slane %v390, 0
      %v761 = vperm.slane %v390, 1
      %v762 = vperm.slane %v390, 2
      %v766 = vmul.f32 %v515, %v760
      %v767 = vmul.f32 %v516, %v761
      %v768 = vmul.f32 %v517, %v762
      %v770 = vperm.slane %v396, 0
      %v771 = vperm.slane %v396, 1
      %v772 = vperm.slane %v396, 2
      %v776 = vmul.f32 %v515, %v770
      %v777 = vmul.f32 %v516, %v771
      %v778 = vmul.f32 %v517, %v772
      %v782 = vrot.slane %v766, 4
      %v783 = vrot.slane %v767, 4
      %v784 = vrot.slane %v768, 4
      %788 = vrot.lane.b32.xlu0 %v525, 127
      %v789 = vpop.permute.xlu0 %788
      %790 = vrot.lane.b32.xlu0 %v526, 127
      %v791 = vpop.permute.xlu0 %790
      %792 = vrot.lane.b32.xlu0 %v527, 127
      %v793 = vpop.permute.xlu0 %792
      %v794 = vsel %vm550, %v789, %v791
      %v795 = vsel %vm550, %v791, %v793
      %799 = vrot.lane.b32.xlu0 %v541, 126
      %v800 = vpop.permute.xlu0 %799
      %801 = vrot.lane.b32.xlu0 %v542, 126
      %v802 = vpop.permute.xlu0 %801
      %803 = vrot.lane.b32.xlu0 %v543, 126
      %v804 = vpop.permute.xlu0 %803
      %v805 = vsel %vm565, %v800, %v802
      %v806 = vsel %vm565, %v802, %v804
      %810 = vrot.lane.b32.xlu0 %v535, 125
      %v811 = vpop.permute.xlu0 %810
      %812 = vrot.lane.b32.xlu0 %v536, 125
      %v813 = vpop.permute.xlu0 %812
      %814 = vrot.lane.b32.xlu0 %v537, 125
      %v815 = vpop.permute.xlu0 %814
      %vm816 = vcmask 1022976
      %v817 = vsel %vm816, %v811, %v813
      %v818 = vsel %vm816, %v813, %v815
      %v825 = vrot.slane %v776, 4
      %v826 = vrot.slane %v777, 4
      %v827 = vrot.slane %v778, 4
      %828 = vrot.lane.b32.xlu0 %v825, 124
      %v829 = vpop.permute.xlu0 %828
      %830 = vrot.lane.b32.xlu0 %v826, 124
      %v831 = vpop.permute.xlu0 %830
      %832 = vrot.lane.b32.xlu0 %v827, 124
      %v833 = vpop.permute.xlu0 %832
      %vm834 = vcmask 1014784
      %v835 = vsel %vm834, %v829, %v831
      %v836 = vsel %vm834, %v831, %v833
      %840 = vrot.lane.b32.xlu0 %v766, 112
      %v841 = vpop.permute.xlu0 %840
      %842 = vrot.lane.b32.xlu0 %v767, 112
      %v843 = vpop.permute.xlu0 %842
      %844 = vrot.lane.b32.xlu0 %v768, 112
      %v845 = vpop.permute.xlu0 %844
      %v846 = vsel %vm583, %v841, %v843
      %v847 = vsel %vm583, %v843, %v845
      %851 = vrot.lane.b32.xlu0 %v574, 111
      %v852 = vpop.permute.xlu0 %851
      %853 = vrot.lane.b32.xlu0 %v575, 111
      %v854 = vpop.permute.xlu0 %853
      %855 = vrot.lane.b32.xlu0 %v576, 111
      %v856 = vpop.permute.xlu0 %855
      %v857 = vsel %vm595, %v852, %v854
      %v858 = vsel %vm595, %v854, %v856
      %862 = vrot.lane.b32.xlu0 %v515, 110
      %v863 = vpop.permute.xlu0 %862
      %864 = vrot.lane.b32.xlu0 %v516, 110
      %v865 = vpop.permute.xlu0 %864
      %866 = vrot.lane.b32.xlu0 %v517, 110
      %v867 = vpop.permute.xlu0 %866
      %v868 = vsel %vm610, %v863, %v865
      %v869 = vsel %vm610, %v865, %v867
      %873 = vrot.lane.b32.xlu0 %v601, 109
      %v874 = vpop.permute.xlu0 %873
      %875 = vrot.lane.b32.xlu0 %v602, 109
      %v876 = vpop.permute.xlu0 %875
      %877 = vrot.lane.b32.xlu0 %v603, 109
      %v878 = vpop.permute.xlu0 %877
      %vm879 = vcmask 891904
      %v880 = vsel %vm879, %v874, %v876
      %v881 = vsel %vm879, %v876, %v878
      %885 = vrot.lane.b32.xlu0 %v776, 108
      %v886 = vpop.permute.xlu0 %885
      %887 = vrot.lane.b32.xlu0 %v777, 108
      %v888 = vpop.permute.xlu0 %887
      %889 = vrot.lane.b32.xlu0 %v778, 108
      %v890 = vpop.permute.xlu0 %889
      %vm891 = vcmask 883712
      %v892 = vsel %vm891, %v886, %v888
      %v893 = vsel %vm891, %v888, %v890
      %897 = vrot.lane.b32.xlu0 %v782, 96
      %v898 = vpop.permute.xlu0 %897
      %899 = vrot.lane.b32.xlu0 %v783, 96
      %v900 = vpop.permute.xlu0 %899
      %901 = vrot.lane.b32.xlu0 %v784, 96
      %v902 = vpop.permute.xlu0 %901
      %v903 = vsel %vm622, %v898, %v900
      %v904 = vsel %vm622, %v900, %v902
      %908 = vrot.lane.b32.xlu0 %v525, 95
      %v909 = vpop.permute.xlu0 %908
      %910 = vrot.lane.b32.xlu0 %v526, 95
      %v911 = vpop.permute.xlu0 %910
      %912 = vrot.lane.b32.xlu0 %v527, 95
      %v913 = vpop.permute.xlu0 %912
      %v914 = vsel %vm634, %v909, %v911
      %v915 = vsel %vm634, %v911, %v913
      %919 = vrot.lane.b32.xlu0 %v541, 94
      %v920 = vpop.permute.xlu0 %919
      %921 = vrot.lane.b32.xlu0 %v542, 94
      %v922 = vpop.permute.xlu0 %921
      %923 = vrot.lane.b32.xlu0 %v543, 94
      %v924 = vpop.permute.xlu0 %923
      %v925 = vsel %vm646, %v920, %v922
      %v926 = vsel %vm646, %v922, %v924
      %930 = vrot.lane.b32.xlu0 %v535, 93
      %v931 = vpop.permute.xlu0 %930
      %932 = vrot.lane.b32.xlu0 %v536, 93
      %v933 = vpop.permute.xlu0 %932
      %934 = vrot.lane.b32.xlu0 %v537, 93
      %v935 = vpop.permute.xlu0 %934
      %vm936 = vcmask 760832
      %v937 = vsel %vm936, %v931, %v933
      %v938 = vsel %vm936, %v933, %v935
      %942 = vrot.lane.b32.xlu0 %v825, 92
      %v943 = vpop.permute.xlu0 %942
      %944 = vrot.lane.b32.xlu0 %v826, 92
      %v945 = vpop.permute.xlu0 %944
      %946 = vrot.lane.b32.xlu0 %v827, 92
      %v947 = vpop.permute.xlu0 %946
      %vm948 = vcmask 752640
      %v949 = vsel %vm948, %v943, %v945
      %v950 = vsel %vm948, %v945, %v947
      %954 = vrot.lane.b32.xlu0 %v766, 80
      %v955 = vpop.permute.xlu0 %954
      %956 = vrot.lane.b32.xlu0 %v767, 80
      %v957 = vpop.permute.xlu0 %956
      %958 = vrot.lane.b32.xlu0 %v768, 80
      %v959 = vpop.permute.xlu0 %958
      %v960 = vsel %vm490, %v955, %v957
      %v961 = vsel %vm490, %v957, %v959
      %v965 = vsel %vm652, %v782, %v794
      %v966 = vsel %vm652, %v783, %v795
      %v967 = vsel %vm652, %v784, %v793
      %v968 = vsel %vm652, %v805, %v817
      %v969 = vsel %vm652, %v806, %v818
      %v970 = vsel %vm652, %v804, %v815
      %v971 = vsel %vm652, %v835, %v846
      %v972 = vsel %vm652, %v836, %v847
      %v973 = vsel %vm652, %v833, %v845
      %v974 = vsel %vm652, %v857, %v868
      %v975 = vsel %vm652, %v858, %v869
      %v976 = vsel %vm652, %v856, %v867
      %v977 = vsel %vm652, %v880, %v892
      %v978 = vsel %vm652, %v881, %v893
      %v979 = vsel %vm652, %v878, %v890
      %v980 = vsel %vm652, %v903, %v914
      %v981 = vsel %vm652, %v904, %v915
      %v982 = vsel %vm652, %v902, %v913
      %v983 = vsel %vm652, %v925, %v937
      %v984 = vsel %vm652, %v926, %v938
      %v985 = vsel %vm652, %v924, %v935
      %v986 = vsel %vm652, %v949, %v960
      %v987 = vsel %vm652, %v950, %v961
      %v988 = vsel %vm652, %v947, %v959
      %992 = vrot.lane.b32.xlu0 %v515, 127
      %v993 = vpop.permute.xlu0 %992
      %994 = vrot.lane.b32.xlu0 %v516, 127
      %v995 = vpop.permute.xlu0 %994
      %996 = vrot.lane.b32.xlu0 %v517, 127
      %v997 = vpop.permute.xlu0 %996
      %v998 = vsel %vm550, %v993, %v995
      %v999 = vsel %vm550, %v995, %v997
      %1003 = vrot.lane.b32.xlu0 %v601, 126
      %v1004 = vpop.permute.xlu0 %1003
      %1005 = vrot.lane.b32.xlu0 %v602, 126
      %v1006 = vpop.permute.xlu0 %1005
      %1007 = vrot.lane.b32.xlu0 %v603, 126
      %v1008 = vpop.permute.xlu0 %1007
      %v1009 = vsel %vm565, %v1004, %v1006
      %v1010 = vsel %vm565, %v1006, %v1008
      %1014 = vrot.lane.b32.xlu0 %v776, 125
      %v1015 = vpop.permute.xlu0 %1014
      %1016 = vrot.lane.b32.xlu0 %v777, 125
      %v1017 = vpop.permute.xlu0 %1016
      %1018 = vrot.lane.b32.xlu0 %v778, 125
      %v1019 = vpop.permute.xlu0 %1018
      %v1020 = vsel %vm816, %v1015, %v1017
      %v1021 = vsel %vm816, %v1017, %v1019
      %1025 = vrot.lane.b32.xlu0 %v782, 113
      %v1026 = vpop.permute.xlu0 %1025
      %1027 = vrot.lane.b32.xlu0 %v783, 113
      %v1028 = vpop.permute.xlu0 %1027
      %1029 = vrot.lane.b32.xlu0 %v784, 113
      %v1030 = vpop.permute.xlu0 %1029
      %vm1031 = vcmask 924672
      %v1032 = vsel %vm1031, %v1026, %v1028
      %v1033 = vsel %vm1031, %v1028, %v1030
      %1037 = vrot.lane.b32.xlu0 %v525, 112
      %v1038 = vpop.permute.xlu0 %1037
      %1039 = vrot.lane.b32.xlu0 %v526, 112
      %v1040 = vpop.permute.xlu0 %1039
      %1041 = vrot.lane.b32.xlu0 %v527, 112
      %v1042 = vpop.permute.xlu0 %1041
      %v1043 = vsel %vm583, %v1038, %v1040
      %v1044 = vsel %vm583, %v1040, %v1042
      %1048 = vrot.lane.b32.xlu0 %v541, 111
      %v1049 = vpop.permute.xlu0 %1048
      %1050 = vrot.lane.b32.xlu0 %v542, 111
      %v1051 = vpop.permute.xlu0 %1050
      %1052 = vrot.lane.b32.xlu0 %v543, 111
      %v1053 = vpop.permute.xlu0 %1052
      %v1054 = vsel %vm595, %v1049, %v1051
      %v1055 = vsel %vm595, %v1051, %v1053
      %1059 = vrot.lane.b32.xlu0 %v535, 110
      %v1060 = vpop.permute.xlu0 %1059
      %1061 = vrot.lane.b32.xlu0 %v536, 110
      %v1062 = vpop.permute.xlu0 %1061
      %1063 = vrot.lane.b32.xlu0 %v537, 110
      %v1064 = vpop.permute.xlu0 %1063
      %v1065 = vsel %vm610, %v1060, %v1062
      %v1066 = vsel %vm610, %v1062, %v1064
      %1070 = vrot.lane.b32.xlu0 %v825, 109
      %v1071 = vpop.permute.xlu0 %1070
      %1072 = vrot.lane.b32.xlu0 %v826, 109
      %v1073 = vpop.permute.xlu0 %1072
      %1074 = vrot.lane.b32.xlu0 %v827, 109
      %v1075 = vpop.permute.xlu0 %1074
      %v1076 = vsel %vm879, %v1071, %v1073
      %v1077 = vsel %vm879, %v1073, %v1075
      %v1078 = vsel %vm652, %v574, %v998
      %v1079 = vsel %vm652, %v575, %v999
      %v1080 = vsel %vm652, %v576, %v997
      %v1081 = vsel %vm652, %v1009, %v1020
      %v1082 = vsel %vm652, %v1010, %v1021
      %v1083 = vsel %vm652, %v1008, %v1019
      %v1084 = vsel %vm652, %v1032, %v1043
      %v1085 = vsel %vm652, %v1033, %v1044
      %v1086 = vsel %vm652, %v1030, %v1042
      %v1087 = vsel %vm652, %v1054, %v1065
      %v1088 = vsel %vm652, %v1055, %v1066
      %v1089 = vsel %vm652, %v1053, %v1064
      %1102 = vrot.lane.b32.xlu0 %v1078, 79
      %v1103 = vpop.permute.xlu0 %1102
      %1104 = vrot.lane.b32.xlu0 %v1079, 79
      %v1105 = vpop.permute.xlu0 %1104
      %1106 = vrot.lane.b32.xlu0 %v1080, 79
      %v1107 = vpop.permute.xlu0 %1106
      %1108 = vrot.lane.b32.xlu0 %v1081, 79
      %v1109 = vpop.permute.xlu0 %1108
      %1110 = vrot.lane.b32.xlu0 %v1082, 79
      %v1111 = vpop.permute.xlu0 %1110
      %1112 = vrot.lane.b32.xlu0 %v1083, 79
      %v1113 = vpop.permute.xlu0 %1112
      %1114 = vrot.lane.b32.xlu0 %v1084, 79
      %v1115 = vpop.permute.xlu0 %1114
      %1116 = vrot.lane.b32.xlu0 %v1085, 79
      %v1117 = vpop.permute.xlu0 %1116
      %1118 = vrot.lane.b32.xlu0 %v1086, 79
      %v1119 = vpop.permute.xlu0 %1118
      %1120 = vrot.lane.b32.xlu0 %v1087, 79
      %v1121 = vpop.permute.xlu0 %1120
      %1122 = vrot.lane.b32.xlu0 %v1088, 79
      %v1123 = vpop.permute.xlu0 %1122
      %1124 = vrot.lane.b32.xlu0 %v1089, 79
      %v1125 = vpop.permute.xlu0 %1124
      %1126 = vrot.lane.b32.xlu0 %v1076, 79
      %v1127 = vpop.permute.xlu0 %1126
      %1128 = vrot.lane.b32.xlu0 %v1077, 79
      %v1129 = vpop.permute.xlu0 %1128
      %1130 = vrot.lane.b32.xlu0 %v1075, 79
      %v1131 = vpop.permute.xlu0 %1130
      %vm1132 = vcmask 646144
      %v1133 = vsel %vm1132, %v1103, %v1105
      %v1134 = vsel %vm1132, %v1105, %v1107
      %v1135 = vsel %vm1132, %v1109, %v1111
      %v1136 = vsel %vm1132, %v1111, %v1113
      %v1137 = vsel %vm1132, %v1115, %v1117
      %v1138 = vsel %vm1132, %v1117, %v1119
      %v1139 = vsel %vm1132, %v1121, %v1123
      %v1140 = vsel %vm1132, %v1123, %v1125
      %v1141 = vsel %vm1132, %v1127, %v1129
      %v1142 = vsel %vm1132, %v1129, %v1131
      %v1158 = vpack.c.bf16 %v968, %v965
      %v1159 = vpack.c.bf16 %v969, %v966
      %v1160 = vpack.c.bf16 %v970, %v967
      %v1161 = vpack.c.bf16 %v974, %v971
      %v1162 = vpack.c.bf16 %v975, %v972
      %v1163 = vpack.c.bf16 %v976, %v973
      %v1164 = vpack.c.bf16 %v980, %v977
      %v1165 = vpack.c.bf16 %v981, %v978
      %v1166 = vpack.c.bf16 %v982, %v979
      %v1167 = vpack.c.bf16 %v986, %v983
      %v1168 = vpack.c.bf16 %v987, %v984
      %v1169 = vpack.c.bf16 %v988, %v985
      %v1170 = vpack.c.bf16 %v1135, %v1133
      %v1171 = vpack.c.bf16 %v1136, %v1134
      %v1172 = vpack.c.bf16 %v1113, %v1107
      %v1173 = vpack.c.bf16 %v1139, %v1137
      %v1174 = vpack.c.bf16 %v1140, %v1138
      %v1175 = vpack.c.bf16 %v1125, %v1119
      %v1176 = vpack.c.bf16 %v1141, %v1141
      %v1177 = vpack.c.bf16 %v1142, %v1142
      %v1178 = vpack.c.bf16 %v1131, %v1131
      %v1179 = vld [vmem:[%s7] sm:$0xf]
      %v1180 = vld [vmem:[%s8] sm:$0xff]
      %1182 = vset.pattern.permute.xlu0 0
      %1183 = vperm.xlu0 %1182, %v1180
      %v1184 = vpop.permute.xlu0 %1183
      %1207 = vrot.lane.b32.xlu0 %v1158, 114
      %v1208 = vpop.permute.xlu0 %1207
      %1209 = vrot.lane.b32.xlu0 %v1159, 114
      %v1210 = vpop.permute.xlu0 %1209
      %1211 = vrot.lane.b32.xlu0 %v1160, 114
      %v1212 = vpop.permute.xlu0 %1211
      %1213 = vrot.lane.b32.xlu0 %v1161, 114
      %v1214 = vpop.permute.xlu0 %1213
      %1215 = vrot.lane.b32.xlu0 %v1162, 114
      %v1216 = vpop.permute.xlu0 %1215
      %1217 = vrot.lane.b32.xlu0 %v1163, 114
      %v1218 = vpop.permute.xlu0 %1217
      %1219 = vrot.lane.b32.xlu0 %v1164, 114
      %v1220 = vpop.permute.xlu0 %1219
      %1221 = vrot.lane.b32.xlu0 %v1165, 114
      %v1222 = vpop.permute.xlu0 %1221
      %1223 = vrot.lane.b32.xlu0 %v1166, 114
      %v1224 = vpop.permute.xlu0 %1223
      %1225 = vrot.lane.b32.xlu0 %v1167, 114
      %v1226 = vpop.permute.xlu0 %1225
      %1227 = vrot.lane.b32.xlu0 %v1168, 114
      %v1228 = vpop.permute.xlu0 %1227
      %1229 = vrot.lane.b32.xlu0 %v1169, 114
      %v1230 = vpop.permute.xlu0 %1229
      %1231 = vrot.lane.b32.xlu0 %v1170, 114
      %v1232 = vpop.permute.xlu0 %1231
      %1233 = vrot.lane.b32.xlu0 %v1171, 114
      %v1234 = vpop.permute.xlu0 %1233
      %1235 = vrot.lane.b32.xlu0 %v1172, 114
      %v1236 = vpop.permute.xlu0 %1235
      %1237 = vrot.lane.b32.xlu0 %v1173, 114
      %v1238 = vpop.permute.xlu0 %1237
      %1239 = vrot.lane.b32.xlu0 %v1174, 114
      %v1240 = vpop.permute.xlu0 %1239
      %1241 = vrot.lane.b32.xlu0 %v1175, 114
      %v1242 = vpop.permute.xlu0 %1241
      %1243 = vrot.lane.b32.xlu0 %v1176, 114
      %v1244 = vpop.permute.xlu0 %1243
      %1245 = vrot.lane.b32.xlu0 %v1177, 114
      %v1246 = vpop.permute.xlu0 %1245
      %1247 = vrot.lane.b32.xlu0 %v1178, 114
      %v1248 = vpop.permute.xlu0 %1247
      %vm1249 = vcmask 932864
      %v1250 = vsel %vm1249, %v1208, %v1210
      %v1251 = vsel %vm1249, %v1210, %v1212
      %v1252 = vsel %vm1249, %v1214, %v1216
      %v1253 = vsel %vm1249, %v1216, %v1218
      %v1254 = vsel %vm1249, %v1220, %v1222
      %v1255 = vsel %vm1249, %v1222, %v1224
      %v1256 = vsel %vm1249, %v1226, %v1228
      %v1257 = vsel %vm1249, %v1228, %v1230
      %v1258 = vsel %vm1249, %v1232, %v1234
      %v1259 = vsel %vm1249, %v1234, %v1236
      %v1260 = vsel %vm1249, %v1238, %v1240
      %v1261 = vsel %vm1249, %v1240, %v1242
      %v1262 = vsel %vm1249, %v1244, %v1246
      %v1263 = vsel %vm1249, %v1246, %v1248
      %vm1276 = vcmask 818176
      %v1278 = vsel %vm1276, %v1179, 0
      %v1281 = vsel %vm421, %v1262, 0
      %v1284 = vsel %vm421, %v1263, 0
      %1286 = vmatpush.bf16.msra.mxu0 0
      %1287 = vmatpush.bf16.msra.mxu0 %v1281
      %1288 = vmatpush.bf16.msra.mxu0 %v1260
      %1289 = vmatpush.bf16.msra.mxu0 %v1258
      %1290 = vmatpush.bf16.msra.mxu0 %v1256
      %1291 = vmatpush.bf16.msra.mxu0 %v1254
      %1292 = vmatpush.bf16.msra.mxu0 %v1252
      %1293 = vmatpush.bf16.msra.mxu0 %v1250
      %1294 = vmatmul.bf16.gmra.mxu0 %v1278
      %v1295 = vpop.f32.mrf.mxu0
      %v1296 = vadd.f32 %v1184, %v1295
      %v1297 = vpop.f32.mrf.mxu0
      %1298 = vdwg.mxu0
      %1299 = vmatpush.bf16.msra.mxu0 0
      %1300 = vmatpush.bf16.msra.mxu0 %v1284
      %1301 = vmatpush.bf16.msra.mxu0 %v1261
      %1302 = vmatpush.bf16.msra.mxu0 %v1259
      %1303 = vmatpush.bf16.msra.mxu0 %v1257
      %1304 = vmatpush.bf16.msra.mxu0 %v1255
      %1305 = vmatpush.bf16.msra.mxu0 %v1253
      %1306 = vmatpush.bf16.msra.mxu0 %v1251
      %1307 = vmatmul.bf16.gmra.mxu0 %v1278
      %v1308 = vpop.f32.mrf.mxu0
      %v1309 = vadd.f32 %v1184, %v1308
      %v1310 = vpop.f32.mrf.mxu0
      %1311 = vdwg.mxu0
      %v1312 = vmax.f32 %v1296, 0.0
      %v1313 = vmax.f32 %v1309, 0.0
      %1314 = vst [vmem:[%s386 + $0x20] sm:$0xff] %v1312
      %1315 = vst [vmem:[%s386 + $0x28] sm:$0xff] %v1313
      %v1316 = vunpack.c.l.bf16 %v404
      %v1317 = vunpack.c.h.bf16 %v404
      %v1319 = vperm.slane %v397, 0
      %v1320 = vperm.slane %v397, 1
      %v1321 = vperm.slane %v397, 2
      %v1323 = vrot.slane %v1320, 4
      %v1324 = vsel %vm652, %v1319, %v1323
      %v1326 = vmin.f32 %v1316, %v1324
      %v1327 = vmin.f32 %v1317, %v1321
      %v1329 = vperm.slane %v399, 0
      %v1330 = vperm.slane %v399, 1
      %v1331 = vperm.slane %v399, 2
      %v1333 = vrot.slane %v1330, 4
      %v1334 = vsel %vm652, %v1329, %v1333
      %v1336 = vmin.f32 %v1326, %v1334
      %v1337 = vmin.f32 %v1327, %v1331
      %v1339 = vperm.slane %v401, 0
      %v1340 = vperm.slane %v401, 1
      %v1341 = vperm.slane %v401, 2
      %v1343 = vrot.slane %v1340, 4
      %v1344 = vsel %vm652, %v1339, %v1343
      %v1346 = vmin.f32 %v1326, %v1344
      %v1347 = vmin.f32 %v1327, %v1341
      %1350 = vrot.lane.b32.xlu0 %v1336, 17
      %v1351 = vpop.permute.xlu0 %1350
      %1352 = vrot.lane.b32.xlu0 %v1337, 17
      %v1353 = vpop.permute.xlu0 %1352
      %v1354 = vrot.slane %v1351, 4
      %vm1355 = vcmask 138240
      %v1356 = vsel %vm1355, %v1354, %v1351
      %v1357 = vsel %vm1355, %v1354, %v1353
      %v1360 = vmax.f32 %v1326, %v1356
      %v1361 = vmax.f32 %v1327, %v1357
      %1364 = vrot.lane.b32.xlu0 %v1326, 16
      %v1365 = vpop.permute.xlu0 %1364
      %1366 = vrot.lane.b32.xlu0 %v1327, 16
      %v1367 = vpop.permute.xlu0 %1366
      %v1368 = vrot.slane %v1365, 4
      %vm1369 = vcmask 130048
      %v1370 = vsel %vm1369, %v1368, %v1365
      %v1371 = vsel %vm1369, %v1368, %v1367
      %v1374 = vmax.f32 %v1360, %v1370
      %v1375 = vmax.f32 %v1361, %v1371
      %1378 = vrot.lane.b32.xlu0 %v1346, 15
      %v1379 = vpop.permute.xlu0 %1378
      %1380 = vrot.lane.b32.xlu0 %v1347, 15
      %v1381 = vpop.permute.xlu0 %1380
      %v1382 = vrot.slane %v1379, 4
      %vm1383 = vcmask 121856
      %v1384 = vsel %vm1383, %v1382, %v1379
      %v1385 = vsel %vm1383, %v1382, %v1381
      %v1388 = vmax.f32 %v1374, %v1384
      %v1389 = vmax.f32 %v1375, %v1385
      %1390 = vrot.lane.b32.xlu0 %v1336, 1
      %v1391 = vpop.permute.xlu0 %1390
      %1392 = vrot.lane.b32.xlu0 %v1337, 1
      %v1393 = vpop.permute.xlu0 %1392
      %v1394 = vrot.slane %v1391, 4
      %vm1395 = vcmask 7168
      %v1396 = vsel %vm1395, %v1394, %v1391
      %v1397 = vsel %vm1395, %v1394, %v1393
      %v1400 = vmax.f32 %v1388, %v1396
      %v1401 = vmax.f32 %v1389, %v1397
      %1402 = vrot.lane.b32.xlu0 %v1346, 127
      %v1403 = vpop.permute.xlu0 %1402
      %1404 = vrot.lane.b32.xlu0 %v1347, 127
      %v1405 = vpop.permute.xlu0 %1404
      %v1406 = vrot.slane %v1403, 4
      %v1407 = vrot.slane %v1405, 4
      %v1408 = vsel %vm652, %v1406, %v1407
      %v1409 = vsel %vm550, %v1403, %v1408
      %v1412 = vmax.f32 %v1400, %v1409
      %v1413 = vmax.f32 %v1401, %v1405
      %1414 = vrot.lane.b32.xlu0 %v1336, 113
      %v1415 = vpop.permute.xlu0 %1414
      %1416 = vrot.lane.b32.xlu0 %v1337, 113
      %v1417 = vpop.permute.xlu0 %1416
      %v1418 = vrot.slane %v1415, 4
      %v1419 = vrot.slane %v1417, 4
      %v1420 = vsel %vm652, %v1418, %v1419
      %v1421 = vsel %vm1031, %v1415, %v1420
      %v1424 = vmax.f32 %v1412, %v1421
      %v1425 = vmax.f32 %v1413, %v1417
      %1426 = vrot.lane.b32.xlu0 %v1326, 112
      %v1427 = vpop.permute.xlu0 %1426
      %1428 = vrot.lane.b32.xlu0 %v1327, 112
      %v1429 = vpop.permute.xlu0 %1428
      %v1430 = vrot.slane %v1427, 4
      %v1431 = vrot.slane %v1429, 4
      %v1432 = vsel %vm652, %v1430, %v1431
      %v1433 = vsel %vm583, %v1427, %v1432
      %v1436 = vmax.f32 %v1424, %v1433
      %v1437 = vmax.f32 %v1425, %v1429
      %1438 = vrot.lane.b32.xlu0 %v1346, 111
      %v1439 = vpop.permute.xlu0 %1438
      %1440 = vrot.lane.b32.xlu0 %v1347, 111
      %v1441 = vpop.permute.xlu0 %1440
      %v1442 = vrot.slane %v1439, 4
      %v1443 = vrot.slane %v1441, 4
      %v1444 = vsel %vm652, %v1442, %v1443
      %v1445 = vsel %vm595, %v1439, %v1444
      %v1448 = vmax.f32 %v1436, %v1445
      %v1449 = vmax.f32 %v1437, %v1441
      %v1450 = vld [vmem:[%s9] sm:$0xf]
      %1453 = vst [vmem:[#allocation1] ss:$2 sm:$0xff] %v1448
      %s1454 = scalar_lea.vmem [#allocation1], 16
      %1455 = vst [vmem:[%s1454] ss:$2 sm:$0xff] %v1449
      %v1456 = vld.sshfl [vmem:[#allocation1] sm:$0xff pattern:$0x75316420]
      %v1457 = vld.sshfl [vmem:[#allocation1 + $0x8] sm:$0xff pattern:$0x75316420]
      %v1458 = vld.sshfl [vmem:[#allocation1 + $0x10] sm:$0xff pattern:$0x75316420]
      %v1462 = vpack.c.bf16 %v1456, %v1456
      %v1463 = vpack.c.bf16 %v1457, %v1457
      %v1464 = vpack.c.bf16 %v1458, %v1458
      %v1465 = vld [vmem:[%s10] sm:$0xff]
      %1467 = vset.pattern.permute.xlu0 0
      %1468 = vperm.xlu0 %1467, %v1465
      %v1469 = vpop.permute.xlu0 %1468
      %1474 = vrot.lane.b32.xlu0 %v1462, 80
      %v1475 = vpop.permute.xlu0 %1474
      %1476 = vrot.lane.b32.xlu0 %v1463, 80
      %v1477 = vpop.permute.xlu0 %1476
      %1478 = vrot.lane.b32.xlu0 %v1464, 80
      %v1479 = vpop.permute.xlu0 %1478
      %vm1480 = vcmask 654336
      %v1481 = vsel %vm1480, %v1475, %v1477
      %v1482 = vsel %vm1480, %v1477, %v1479
      %v1484 = vsel %vm417, %v1450, 0
      %v1487 = vsel %vm421, %v1481, 0
      %v1490 = vsel %vm421, %v1482, 0
      %1492 = vmatpush.bf16.msra.mxu0 0
      %1493 = vmatpush.bf16.msra.mxu0 0
      %1494 = vmatpush.bf16.msra.mxu0 0
      %1495 = vmatpush.bf16.msra.mxu0 0
      %1496 = vmatpush.bf16.msra.mxu0 0
      %1497 = vmatpush.bf16.msra.mxu0 0
      %1498 = vmatpush.bf16.msra.mxu0 0
      %1499 = vmatpush.bf16.msra.mxu0 %v1487
      %1500 = vmatmul.bf16.gmra.mxu0 %v1484
      %v1501 = vpop.f32.mrf.mxu0
      %v1502 = vadd.f32 %v1469, %v1501
      %v1503 = vpop.f32.mrf.mxu0
      %1504 = vdwg.mxu0
      %1505 = vmatpush.bf16.msra.mxu0 0
      %1506 = vmatpush.bf16.msra.mxu0 0
      %1507 = vmatpush.bf16.msra.mxu0 0
      %1508 = vmatpush.bf16.msra.mxu0 0
      %1509 = vmatpush.bf16.msra.mxu0 0
      %1510 = vmatpush.bf16.msra.mxu0 0
      %1511 = vmatpush.bf16.msra.mxu0 0
      %1512 = vmatpush.bf16.msra.mxu0 %v1490
      %1513 = vmatmul.bf16.gmra.mxu0 %v1484
      %v1514 = vpop.f32.mrf.mxu0
      %v1515 = vadd.f32 %v1469, %v1514
      %v1516 = vpop.f32.mrf.mxu0
      %1517 = vdwg.mxu0
      %v1518 = vmax.f32 %v1502, 0.0
      %v1519 = vmax.f32 %v1515, 0.0
      %1520 = vst [vmem:[%s386 + $0x30] sm:$0xff] %v1518
      %1521 = vst [vmem:[%s386 + $0x38] sm:$0xff] %v1519
      %p1522 = scmp.lt.s32.totalorder %s22, 1
      %s1523 = scalar_select %p1522, %s22, 1
      %s1524 = smul.addr %s1523, 8
      %s1525 = smul.addr %s1524, 8
      %s1526 = scalar_lea.vmem %s11, %s1525
      // Predicated region
      $region65: #{inception_forward.1} parent=63 // pred_check
        %p1527 = pneg %p276
      $region66: #{inception_forward.1} parent=63 // pred_check_branch
        %1529 = sbr.rel (%p1527) target = $region68
      $region67: #{inception_forward.1} parent=63 // pred_region
        _
      $region68: #{inception_forward.1} parent=63 // pred_fallthru
        _
    $region64: #{inception_forward.1} parent=5 // pred_fallthru
      _
    %p1530 = scmp.le.s32.totalorder 2, %s17
    // Predicated region
    $region69: #{inception_forward.1} parent=5 // pred_check
      %p1531 = pneg %p1530
    $region70: #{inception_forward.1} parent=5 // pred_check_branch
      %1533 = sbr.rel (%p1531) target = $region72
    $region71: #{inception_forward.1} parent=5 // pred_region
      %s1534 = ssub.s32 %s17, 2
      // Predicated region
      $region73: #{inception_forward.1} parent=71 // pred_check
        %p1535 = pneg %p282
      $region74: #{inception_forward.1} parent=71 // pred_check_branch
        %1537 = sbr.rel (%p1535) target = $region76
      $region75: #{inception_forward.1} parent=71 // pred_region
        %p1538 = scmp.lt.s32.totalorder %s23, 1
        %s1539 = scalar_select %p1538, %s23, 1
        %s1540 = smul.addr %s1539, 8
        %s1541 = smul.addr %s1540, 8
        %s1542 = scalar_lea.vmem %s11, %s1541
      $region76: #{inception_forward.1} parent=71 // pred_fallthru
        _
    $region72: #{inception_forward.1} parent=5 // pred_fallthru
      _
  $region6: #{inception_forward.1} parent=0 // loop_footer
    %s21 = sadd.s32 1, %s17
  $region7: #{inception_forward.1} parent=0 // loop_footer_branch
    %16 = sbr.rel target = $region3
  $region8: #{inception_forward.1} parent=0 // loop_exit
    _

</llo_original>
